<compile_context>
chip_gen: v5e
topology: v5e:2x2
jax: 0.10.0
libtpu: 0.0.40
codegen_flags: <defaults>
</compile_context>

<pallas_src>
import functools
import math

import numpy as np
import jax
import jax.numpy as jnp
from jax.experimental import pallas as pl
from jax.experimental.pallas import tpu as pltpu


def _round_up(x, m):
    return ((x + m - 1) // m) * m


def _pos_embed_kernel(sin_y_ref, sin_x_ref, o_ref, *, num_pos_feats):
    """Fills one (2F, TILE_H, TILE_W) output tile by broadcasting the sin tables."""
    F = num_pos_feats
    _, th, tw = o_ref.shape
    # First F channels: pos_y (constant along W) -> lane broadcast of (F, TILE_H, 1).
    o_ref[:F, :, :] = jnp.broadcast_to(sin_y_ref[...], (F, th, tw)).astype(o_ref.dtype)
    # Last  F channels: pos_x (constant along H) -> sublane broadcast of (F, 1, TILE_W).
    o_ref[F:, :, :] = jnp.broadcast_to(sin_x_ref[...], (F, th, tw)).astype(o_ref.dtype)


def _choose_tiles(C, H, W, target_bytes=4 << 20):
    """(TILE_H, TILE_W) obeying the (8,128)/full-dim rule within a VMEM budget."""
    item = 4
    w_pad = _round_up(W, 128)            # VMEM lane padding of a full-width block
    h_unit = H if H < 8 else 8           # smallest legal H tile
    if C * _round_up(h_unit, 8) * w_pad * item <= target_bytes:
        tile_w = W                       # full rows per block -> contiguous HBM stores
        max_h = target_bytes // (C * w_pad * item)
        if H <= max_h:
            # Whole slab fits one block; still split in two when cheap so the grid
            # has >= 2 steps (lets v7x spread tiles over both TensorCores).
            tile_h = H // 2 if (H % 16 == 0) else H
        else:
            tile_h = max(h_unit, (min(max_h, H) // 8) * 8)
    else:
        # Very wide rows: tile W in lane-aligned chunks, one 8-row band at a time.
        tile_h = h_unit
        max_w = max(128, (target_bytes // (C * _round_up(tile_h, 8) * item)) // 128 * 128)
        tile_w = min(W, max_w)
    return tile_h, tile_w


def position_embedding_sine_2d_slab(H, W, num_pos_feats=64, temperature=10000,
                                    out_dtype=jnp.float32):
    """Batch-independent (2*num_pos_feats, H, W) sine positional embedding."""
    assert num_pos_feats % 2 == 0, "num_pos_feats must be even (as in the PyTorch module)"
    F = num_pos_feats
    C = 2 * F
    eps = 1e-6
    scale = 2.0 * math.pi

    # Host-side tables: F*(H+W) sins instead of 2*F*H*W inside the kernel.
    # cos(x) == sin(x + pi/2) folds the even/odd sin/cos interleave into a phase.
    f = np.arange(F, dtype=np.float64)
    inv_dim = np.float64(temperature) ** (-2.0 * np.floor(f / 2.0) / float(F))  # 1/dim_t
    phase = (f % 2) * (math.pi / 2.0)
    y_vals = np.arange(1, H + 1, dtype=np.float64) / (H + eps) * scale
    x_vals = np.arange(1, W + 1, dtype=np.float64) / (W + eps) * scale
    sin_y = np.sin(y_vals[None, :] * inv_dim[:, None] + phase[:, None])   # (F, H)
    sin_x = np.sin(x_vals[None, :] * inv_dim[:, None] + phase[:, None])   # (F, W)
    sin_y = jnp.asarray(sin_y.astype(np.float32).reshape(F, H, 1))
    sin_x = jnp.asarray(sin_x.astype(np.float32).reshape(F, 1, W))

    tile_h, tile_w = _choose_tiles(C, H, W)
    grid = (pl.cdiv(H, tile_h), pl.cdiv(W, tile_w))

    kernel = functools.partial(_pos_embed_kernel, num_pos_feats=F)

    slab = pl.pallas_call(
        kernel,
        out_shape=jax.ShapeDtypeStruct((C, H, W), out_dtype),
        grid_spec=pltpu.PrefetchScalarGridSpec(
            num_scalar_prefetch=0,
            grid=grid,
            in_specs=[
                pl.BlockSpec((F, tile_h, 1), lambda i, j: (0, i, 0)),
                pl.BlockSpec((F, 1, tile_w), lambda i, j: (0, 0, j)),
            ],
            out_specs=pl.BlockSpec((C, tile_h, tile_w), lambda i, j: (0, i, j)),
        ),
        compiler_params=pltpu.CompilerParams(
            dimension_semantics=("parallel", "parallel"),
            vmem_limit_bytes=32 * 1024 * 1024,
        ),
    )(sin_y, sin_x)
    return slab


def position_embedding_sine_2d(data, num_pos_feats=64, temperature=10000):
    """JAX/Pallas equivalent of PositionEmbeddingSine2D.forward (NCHW in/out)."""
    assert data.ndim == 4
    b, _, H, W = data.shape
    pos = position_embedding_sine_2d_slab(H, W, num_pos_feats, temperature)
    # Identical for every batch element; keep the replication as a broadcast.
    # Consumers that just add the embedding should use the slab directly.
    return jnp.broadcast_to(pos[None], (b, 2 * num_pos_feats, H, W))


def _reference(data, num_pos_feats=64, temperature=10000):
    """Plain-JAX reference mirroring the PyTorch code (for a sanity check)."""
    b, _, H, W = data.shape
    scale = 2.0 * math.pi
    not_mask = jnp.ones((b, H, W), jnp.float32)
    y_embed = jnp.cumsum(not_mask, axis=1)
    x_embed = jnp.cumsum(not_mask, axis=2)
    eps = 1e-6
    y_embed = y_embed / (y_embed[:, -1:, :] + eps) * scale
    x_embed = x_embed / (x_embed[:, :, -1:] + eps) * scale
    dim_t = jnp.arange(num_pos_feats, dtype=jnp.float32)
    dim_t = temperature ** (2 * (dim_t // 2) / num_pos_feats)
    pos_x = x_embed[:, :, :, None] / dim_t
    pos_y = y_embed[:, :, :, None] / dim_t
    pos_x = jnp.stack((jnp.sin(pos_x[..., 0::2]), jnp.cos(pos_x[..., 1::2])), axis=4).reshape(b, H, W, -1)
    pos_y = jnp.stack((jnp.sin(pos_y[..., 0::2]), jnp.cos(pos_y[..., 1::2])), axis=4).reshape(b, H, W, -1)
    pos = jnp.concatenate((pos_y, pos_x), axis=3).transpose(0, 3, 1, 2)
    return pos


if __name__ == "__main__":
    key = jax.random.PRNGKey(0)
    # Small NCHW input; only its shape matters (matches the PyTorch forward).
    x = jax.random.normal(key, (2, 4, 16, 16), dtype=jnp.float32)

    pos = position_embedding_sine_2d(x, num_pos_feats=64, temperature=10000)
    pos = jax.block_until_ready(pos)

    ref = _reference(x, num_pos_feats=64, temperature=10000)
    assert pos.shape == (2, 128, 16, 16)
    assert jnp.allclose(pos, ref, atol=1e-5), "mismatch vs reference"

    print("KERNEL_OK")
</pallas_src>

<mosaic_0001>
module attributes {stable_mosaic.version = 11 : i64} {
  func.func @_pos_embed_kernel(%arg0: i32, %arg1: i32, %arg2: memref<64x8x1xf32, #tpu.memory_space<vmem>>, %arg3: memref<64x1x16xf32, #tpu.memory_space<vmem>>, %arg4: memref<128x8x16xf32, #tpu.memory_space<vmem>>) attributes {dimension_semantics = [#tpu.dimension_semantics<parallel>, #tpu.dimension_semantics<parallel>], iteration_bounds = array<i64: 2, 1>, scalar_prefetch = 0 : i64, scratch_operands = 0 : i64, tpu.core_type = #tpu.core_type<tc>, window_params = [{transform_indices = @transform_0, window_bounds = array<i64: 64, 8, 1>}, {transform_indices = @transform_1, window_bounds = array<i64: 64, 1, 16>}, {transform_indices = @transform_2, window_bounds = array<i64: 128, 8, 16>}]} {
    %c0 = arith.constant 0 : index
    %c0_0 = arith.constant 0 : index
    %c0_1 = arith.constant 0 : index
    %0 = vector.load %arg2[%c0, %c0_0, %c0_1] : memref<64x8x1xf32, #tpu.memory_space<vmem>>, vector<64x8x1xf32>
    %1 = vector.shape_cast %0 : vector<64x8x1xf32> to vector<64x8x1xf32>
    %2 = vector.broadcast %1 : vector<64x8x1xf32> to vector<64x8x16xf32>
    %c0_2 = arith.constant 0 : index
    %c0_3 = arith.constant 0 : index
    %c0_4 = arith.constant 0 : index
    %3 = vector.load %arg4[%c0_2, %c0_3, %c0_4] : memref<128x8x16xf32, #tpu.memory_space<vmem>>, vector<64x8x16xf32>
    tpu.vector_store %arg4[%c0_2, %c0_3, %c0_4], %2 {strides = array<i32>} : memref<128x8x16xf32, #tpu.memory_space<vmem>>, vector<64x8x16xf32>,
    %c0_5 = arith.constant 0 : index
    %c0_6 = arith.constant 0 : index
    %c0_7 = arith.constant 0 : index
    %4 = vector.load %arg3[%c0_5, %c0_6, %c0_7] : memref<64x1x16xf32, #tpu.memory_space<vmem>>, vector<64x1x16xf32>
    %5 = vector.shape_cast %4 : vector<64x1x16xf32> to vector<64x1x16xf32>
    %6 = vector.broadcast %5 : vector<64x1x16xf32> to vector<64x8x16xf32>
    %c64 = arith.constant 64 : index
    %c0_8 = arith.constant 0 : index
    %c0_9 = arith.constant 0 : index
    %7 = vector.load %arg4[%c64, %c0_8, %c0_9] : memref<128x8x16xf32, #tpu.memory_space<vmem>>, vector<64x8x16xf32>
    tpu.vector_store %arg4[%c64, %c0_8, %c0_9], %6 {strides = array<i32>} : memref<128x8x16xf32, #tpu.memory_space<vmem>>, vector<64x8x16xf32>,
    return
  }
  func.func @transform_0(%arg0: i32, %arg1: i32) -> (i32, i32, i32) {
    %c0_i32 = arith.constant 0 : i32
    %c0_i32_0 = arith.constant 0 : i32
    %c0_i32_1 = arith.constant 0 : i32
    return %c0_i32, %arg0, %c0_i32_0 : i32, i32, i32
  }
  func.func @transform_1(%arg0: i32, %arg1: i32) -> (i32, i32, i32) {
    %c0_i32 = arith.constant 0 : i32
    %c0_i32_0 = arith.constant 0 : i32
    %c0_i32_1 = arith.constant 0 : i32
    return %c0_i32, %c0_i32_0, %arg1 : i32, i32, i32
  }
  func.func @transform_2(%arg0: i32, %arg1: i32) -> (i32, i32, i32) {
    %c0_i32 = arith.constant 0 : i32
    %c0_i32_0 = arith.constant 0 : i32
    return %c0_i32, %arg0, %arg1 : i32, i32, i32
  }
}

</mosaic_0001>

<llo_original>
// kernel: tpu_custom_call.1
$region0: #{tpu_custom_call.1}
  #allocation0 [shape = 'u32[]', space=smem, size = 0x4, offset = 0x4, fixed_abs, tag = 'smem constant byte address 0x4 - core index']
  #allocation1 [shape = 'u32[72,128]{1,0:T(1,128)}', space=vmem, size = 0x9000, scoped, tag = 'internal scratch']
  %s0 = inlined_call_operand.vmem [shape: f32[64,16,1], index: 0, kind: input, shape index: {}]
  %s1 = inlined_call_operand.vmem [shape: f32[64,1,16], index: 1, kind: input, shape index: {}]
  %s2 = inlined_call_operand.vmem [shape: f32[128,16,16], index: 2, kind: output, shape index: {}]
  %s3 = sld [smem:[#allocation0]]
  $region113: #{tpu_custom_call.1} parent=0
    _
  %s5 = ssub.s32 1, %s3
  %s6 = scalar_select 0, %s5, %s3
  $region1: #{tpu_custom_call.1} parent=0
    #allocation2 [shape = 'u8[524288]{0}', space=vmem, size = 0x80000, scoped, tag = 'input window, operand 0']
    #allocation3 [shape = 'u8[1048576]{0}', space=vmem, size = 0x100000, scoped, tag = 'output window, operand 0']
    loop: start=0, step=1, limit=4
    $region2: #{tpu_custom_call.1} parent=1 // loop_pre_header
      _
    $region3: #{tpu_custom_call.1} parent=1 // loop_header
      %s8 = sphi 0, %s12
      %p9 = scmp.ge.s32.totalorder %s8, 4
      %s15 = sphi 0, %s27
      %s16 = sphi 0, %s23
      %s17 = sphi 0, %s15
      %s18 = sphi 0, %s16
      %s19 = sphi 0, %s17
      %s20 = sphi 0, %s18
      %s30 = sphi 0, %s32
      %s33 = sphi 0, %s30
      %s34 = sphi 0, %s33
      %s50 = sphi 0, %s34
      %s56 = sphi 0, %s58
      %s59 = sphi 0, %s56
      %s60 = sphi 0, %s59
      %s76 = sphi 0, %s60
      %s84 = sphi 0, %s86
      %s87 = sphi 0, %s84
      %s88 = sphi 0, %s87
      %s104 = sphi 0, %s88
    $region4: #{tpu_custom_call.1} parent=1 // loop_header_branch
      %11 = sbr.rel (%p9) target = $region8
    $region5: #{tpu_custom_call.1} parent=1 // loop_body
      %s13 = ssub.s32 %s8, 1
      %s14 = ssub.s32 %s8, 2
      %s21 = sadd.s32 1, %s16
      %p22 = scmp.ge.s32.totalorder %s21, 1
      %s23 = scalar_select %p22, 0, %s21
      %s24 = sadd.s32 1, %s15
      %s25 = scalar_select %p22, %s24, %s15
      %p26 = scmp.ge.s32.totalorder %s25, 2
      %s27 = scalar_select %p26, 0, %s25
      %s28 = ssub.s32 %s15, %s27
      %p29 = scmp.eq.s32.totalorder %s28, 0
      %s31 = sadd.s32 %s30, 1
      %s32 = scalar_select %p29, %s30, %s31
      %p35 = pneg %p29
      %p36 = scmp.eq.s32.totalorder %s8, 1
      %p37 = por %p35, %p36
      %p38 = scmp.ne.s32.totalorder %s30, %s33
      %p39 = scmp.eq.s32.totalorder %s8, 0
      %p40 = por %p38, %p39
      %p41 = scmp.ne.s32.totalorder %s30, %s33
      %p42 = scmp.eq.s32.totalorder %s13, 1
      %p43 = por %p41, %p42
      %p44 = scmp.ne.s32.totalorder %s33, %s34
      %p45 = scmp.eq.s32.totalorder %s13, 0
      %p46 = por %p44, %p45
      %p47 = scmp.ne.s32.totalorder %s33, %s34
      %p48 = scmp.eq.s32.totalorder %s14, 1
      %p49 = por %p47, %p48
      %p51 = scmp.ne.s32.totalorder %s34, %s50
      %p52 = scmp.eq.s32.totalorder %s14, 0
      %p53 = por %p51, %p52
      %s54 = ssub.s32 %s16, %s23
      %p55 = scmp.eq.s32.totalorder %s54, 0
      %s57 = sadd.s32 %s56, 1
      %s58 = scalar_select %p55, %s56, %s57
      %p61 = pneg %p55
      %p62 = scmp.eq.s32.totalorder %s8, 1
      %p63 = por %p61, %p62
      %p64 = scmp.ne.s32.totalorder %s56, %s59
      %p65 = scmp.eq.s32.totalorder %s8, 0
      %p66 = por %p64, %p65
      %p67 = scmp.ne.s32.totalorder %s56, %s59
      %p68 = scmp.eq.s32.totalorder %s13, 1
      %p69 = por %p67, %p68
      %p70 = scmp.ne.s32.totalorder %s59, %s60
      %p71 = scmp.eq.s32.totalorder %s13, 0
      %p72 = por %p70, %p71
      %p73 = scmp.ne.s32.totalorder %s59, %s60
      %p74 = scmp.eq.s32.totalorder %s14, 1
      %p75 = por %p73, %p74
      %p77 = scmp.ne.s32.totalorder %s60, %s76
      %p78 = scmp.eq.s32.totalorder %s14, 0
      %p79 = por %p77, %p78
      %s80 = ssub.s32 %s15, %s27
      %s81 = ssub.s32 %s16, %s23
      %s82 = sor.u32 %s80, %s81
      %p83 = scmp.eq.s32.totalorder %s82, 0
      %s85 = sadd.s32 %s84, 1
      %s86 = scalar_select %p83, %s84, %s85
      %p89 = pneg %p83
      %p90 = scmp.eq.s32.totalorder %s8, 1
      %p91 = por %p89, %p90
      %p92 = scmp.ne.s32.totalorder %s84, %s87
      %p93 = scmp.eq.s32.totalorder %s8, 0
      %p94 = por %p92, %p93
      %p95 = scmp.ne.s32.totalorder %s84, %s87
      %p96 = scmp.eq.s32.totalorder %s13, 1
      %p97 = por %p95, %p96
      %p98 = scmp.ne.s32.totalorder %s87, %s88
      %p99 = scmp.eq.s32.totalorder %s13, 0
      %p100 = por %p98, %p99
      %p101 = scmp.ne.s32.totalorder %s87, %s88
      %p102 = scmp.eq.s32.totalorder %s14, 1
      %p103 = por %p101, %p102
      %p105 = scmp.ne.s32.totalorder %s88, %s104
      %p106 = scmp.eq.s32.totalorder %s14, 0
      %p107 = por %p105, %p106
      %p108 = scmp.le.s32.totalorder 1, %s8
      %p109 = scmp.lt.s32.totalorder %s8, 3
      %p110 = pnand %p108, %p109
      %p111 = pneg %p110
      // Predicated region
      $region9: #{tpu_custom_call.1} parent=5 // pred_check
        _
      $region10: #{tpu_custom_call.1} parent=5 // pred_check_branch
        %113 = sbr.rel (%p110) target = $region12
      $region11: #{tpu_custom_call.1} parent=5 // pred_region
        %s114 = ssub.s32 %s8, 1
        // Predicated region
        $region13: #{tpu_custom_call.1} parent=11 // pred_check
          %p115 = pneg %p72
        $region14: #{tpu_custom_call.1} parent=11 // pred_check_branch
          %117 = sbr.rel (%p115) target = $region16
        $region15: #{tpu_custom_call.1} parent=11 // pred_region
          %p118 = scmp.lt.s32.totalorder %s18, 0
          %s119 = scalar_select %p118, %s18, 0
          %s120 = scalar_lea.vmem %s1, %s119
        $region16: #{tpu_custom_call.1} parent=11 // pred_fallthru
          _
      $region12: #{tpu_custom_call.1} parent=5 // pred_fallthru
        _
      %p121 = scmp.lt.s32.totalorder %s8, 2
      // Predicated region
      $region17: #{tpu_custom_call.1} parent=5 // pred_check
        %p122 = pneg %p121
      $region18: #{tpu_custom_call.1} parent=5 // pred_check_branch
        %124 = sbr.rel (%p122) target = $region20
      $region19: #{tpu_custom_call.1} parent=5 // pred_region
        // Predicated region
        $region21: #{tpu_custom_call.1} parent=19 // pred_check
          %p125 = pneg %p40
        $region22: #{tpu_custom_call.1} parent=19 // pred_check_branch
          %127 = sbr.rel (%p125) target = $region24
        $region23: #{tpu_custom_call.1} parent=19 // pred_region
          %s128 = sand.u32 %s30, 1
          %s129 = sand.u32 %s30, 1
          %s130 = smul.addr %s129, 512
          %s131 = scalar_lea.vmem [#allocation2], %s130
          %s132 = smul.addr %s15, 8
          %s133 = scalar_lea.vmem %s0, %s132
          // Predicated region
          $region25: #{tpu_custom_call.1} parent=23 // pred_check
            _
          $region26: #{tpu_custom_call.1} parent=23 // pred_check_branch
            %135 = sbr.rel (0) target = $region28
          $region27: #{tpu_custom_call.1} parent=23 // pred_region
            // Predicated region
            $region29: #{tpu_custom_call.1} parent=27 // pred_check
              _
            $region30: #{tpu_custom_call.1} parent=27 // pred_check_branch
              %137 = sbr.rel (0) target = $region32
            $region31: #{tpu_custom_call.1} parent=27 // pred_region
              // Predicated region
              $region44: #{tpu_custom_call.1} parent=31 // pred_check
                _
              $region45: #{tpu_custom_call.1} parent=31 // pred_check_branch
                %279 = sbr.rel (0) target = $region47
              $region46: #{tpu_custom_call.1} parent=31 // pred_region
                loop: start=0, step=1, limit=1
                $region48: #{tpu_custom_call.1} parent=46 // loop_pre_header
                  _
                $region49: #{tpu_custom_call.1} parent=46 // loop_header
                  %s281 = sphi 0, %s285
                  %p282 = scmp.ge.s32.totalorder %s281, 1
                  %s286 = sphi %s133, %s133
                  %s287 = sphi %s131, %s131
                $region50: #{tpu_custom_call.1} parent=46 // loop_header_branch
                  %284 = sbr.rel (%p282) target = $region54
                $region51: #{tpu_custom_call.1} parent=46 // loop_body
                  %v288 = vld [vmem:[%s286] sm:$0xff]
                  %289 = vst [vmem:[%s287] sm:$0xff] %v288
                  %v290 = vld [vmem:[%s286 + $0x10] sm:$0xff]
                  %291 = vst [vmem:[%s287 + $0x8] sm:$0xff] %v290
                  %v292 = vld [vmem:[%s286 + $0x20] sm:$0xff]
                  %293 = vst [vmem:[%s287 + $0x10] sm:$0xff] %v292
                  %v294 = vld [vmem:[%s286 + $0x30] sm:$0xff]
                  %295 = vst [vmem:[%s287 + $0x18] sm:$0xff] %v294
                  %v296 = vld [vmem:[%s286 + $0x40] sm:$0xff]
                  %297 = vst [vmem:[%s287 + $0x20] sm:$0xff] %v296
                  %v298 = vld [vmem:[%s286 + $0x50] sm:$0xff]
                  %299 = vst [vmem:[%s287 + $0x28] sm:$0xff] %v298
                  %v300 = vld [vmem:[%s286 + $0x60] sm:$0xff]
                  %301 = vst [vmem:[%s287 + $0x30] sm:$0xff] %v300
                  %v302 = vld [vmem:[%s286 + $0x70] sm:$0xff]
                  %303 = vst [vmem:[%s287 + $0x38] sm:$0xff] %v302
                  %v304 = vld [vmem:[%s286 + $0x80] sm:$0xff]
                  %305 = vst [vmem:[%s287 + $0x40] sm:$0xff] %v304
                  %v306 = vld [vmem:[%s286 + $0x90] sm:$0xff]
                  %307 = vst [vmem:[%s287 + $0x48] sm:$0xff] %v306
                  %v308 = vld [vmem:[%s286 + $0xa0] sm:$0xff]
                  %309 = vst [vmem:[%s287 + $0x50] sm:$0xff] %v308
                  %v310 = vld [vmem:[%s286 + $0xb0] sm:$0xff]
                  %311 = vst [vmem:[%s287 + $0x58] sm:$0xff] %v310
                  %v312 = vld [vmem:[%s286 + $0xc0] sm:$0xff]
                  %313 = vst [vmem:[%s287 + $0x60] sm:$0xff] %v312
                  %v314 = vld [vmem:[%s286 + $0xd0] sm:$0xff]
                  %315 = vst [vmem:[%s287 + $0x68] sm:$0xff] %v314
                  %v316 = vld [vmem:[%s286 + $0xe0] sm:$0xff]
                  %317 = vst [vmem:[%s287 + $0x70] sm:$0xff] %v316
                  %v318 = vld [vmem:[%s286 + $0xf0] sm:$0xff]
                  %319 = vst [vmem:[%s287 + $0x78] sm:$0xff] %v318
                  %v320 = vld [vmem:[%s286 + $0x100] sm:$0xff]
                  %321 = vst [vmem:[%s287 + $0x80] sm:$0xff] %v320
                  %v322 = vld [vmem:[%s286 + $0x110] sm:$0xff]
                  %323 = vst [vmem:[%s287 + $0x88] sm:$0xff] %v322
                  %v324 = vld [vmem:[%s286 + $0x120] sm:$0xff]
                  %325 = vst [vmem:[%s287 + $0x90] sm:$0xff] %v324
                  %v326 = vld [vmem:[%s286 + $0x130] sm:$0xff]
                  %327 = vst [vmem:[%s287 + $0x98] sm:$0xff] %v326
                  %v328 = vld [vmem:[%s286 + $0x140] sm:$0xff]
                  %329 = vst [vmem:[%s287 + $0xa0] sm:$0xff] %v328
                  %v330 = vld [vmem:[%s286 + $0x150] sm:$0xff]
                  %331 = vst [vmem:[%s287 + $0xa8] sm:$0xff] %v330
                  %v332 = vld [vmem:[%s286 + $0x160] sm:$0xff]
                  %333 = vst [vmem:[%s287 + $0xb0] sm:$0xff] %v332
                  %v334 = vld [vmem:[%s286 + $0x170] sm:$0xff]
                  %335 = vst [vmem:[%s287 + $0xb8] sm:$0xff] %v334
                  %v336 = vld [vmem:[%s286 + $0x180] sm:$0xff]
                  %337 = vst [vmem:[%s287 + $0xc0] sm:$0xff] %v336
                  %v338 = vld [vmem:[%s286 + $0x190] sm:$0xff]
                  %339 = vst [vmem:[%s287 + $0xc8] sm:$0xff] %v338
                  %v340 = vld [vmem:[%s286 + $0x1a0] sm:$0xff]
                  %341 = vst [vmem:[%s287 + $0xd0] sm:$0xff] %v340
                  %v342 = vld [vmem:[%s286 + $0x1b0] sm:$0xff]
                  %343 = vst [vmem:[%s287 + $0xd8] sm:$0xff] %v342
                  %v344 = vld [vmem:[%s286 + $0x1c0] sm:$0xff]
                  %345 = vst [vmem:[%s287 + $0xe0] sm:$0xff] %v344
                  %v346 = vld [vmem:[%s286 + $0x1d0] sm:$0xff]
                  %347 = vst [vmem:[%s287 + $0xe8] sm:$0xff] %v346
                  %v348 = vld [vmem:[%s286 + $0x1e0] sm:$0xff]
                  %349 = vst [vmem:[%s287 + $0xf0] sm:$0xff] %v348
                  %v350 = vld [vmem:[%s286 + $0x1f0] sm:$0xff]
                  %351 = vst [vmem:[%s287 + $0xf8] sm:$0xff] %v350
                  %v352 = vld [vmem:[%s286 + $0x200] sm:$0xff]
                  %353 = vst [vmem:[%s287 + $0x100] sm:$0xff] %v352
                  %v354 = vld [vmem:[%s286 + $0x210] sm:$0xff]
                  %355 = vst [vmem:[%s287 + $0x108] sm:$0xff] %v354
                  %v356 = vld [vmem:[%s286 + $0x220] sm:$0xff]
                  %357 = vst [vmem:[%s287 + $0x110] sm:$0xff] %v356
                  %v358 = vld [vmem:[%s286 + $0x230] sm:$0xff]
                  %359 = vst [vmem:[%s287 + $0x118] sm:$0xff] %v358
                  %v360 = vld [vmem:[%s286 + $0x240] sm:$0xff]
                  %361 = vst [vmem:[%s287 + $0x120] sm:$0xff] %v360
                  %v362 = vld [vmem:[%s286 + $0x250] sm:$0xff]
                  %363 = vst [vmem:[%s287 + $0x128] sm:$0xff] %v362
                  %v364 = vld [vmem:[%s286 + $0x260] sm:$0xff]
                  %365 = vst [vmem:[%s287 + $0x130] sm:$0xff] %v364
                  %v366 = vld [vmem:[%s286 + $0x270] sm:$0xff]
                  %367 = vst [vmem:[%s287 + $0x138] sm:$0xff] %v366
                  %v368 = vld [vmem:[%s286 + $0x280] sm:$0xff]
                  %369 = vst [vmem:[%s287 + $0x140] sm:$0xff] %v368
                  %v370 = vld [vmem:[%s286 + $0x290] sm:$0xff]
                  %371 = vst [vmem:[%s287 + $0x148] sm:$0xff] %v370
                  %v372 = vld [vmem:[%s286 + $0x2a0] sm:$0xff]
                  %373 = vst [vmem:[%s287 + $0x150] sm:$0xff] %v372
                  %v374 = vld [vmem:[%s286 + $0x2b0] sm:$0xff]
                  %375 = vst [vmem:[%s287 + $0x158] sm:$0xff] %v374
                  %v376 = vld [vmem:[%s286 + $0x2c0] sm:$0xff]
                  %377 = vst [vmem:[%s287 + $0x160] sm:$0xff] %v376
                  %v378 = vld [vmem:[%s286 + $0x2d0] sm:$0xff]
                  %379 = vst [vmem:[%s287 + $0x168] sm:$0xff] %v378
                  %v380 = vld [vmem:[%s286 + $0x2e0] sm:$0xff]
                  %381 = vst [vmem:[%s287 + $0x170] sm:$0xff] %v380
                  %v382 = vld [vmem:[%s286 + $0x2f0] sm:$0xff]
                  %383 = vst [vmem:[%s287 + $0x178] sm:$0xff] %v382
                  %v384 = vld [vmem:[%s286 + $0x300] sm:$0xff]
                  %385 = vst [vmem:[%s287 + $0x180] sm:$0xff] %v384
                  %v386 = vld [vmem:[%s286 + $0x310] sm:$0xff]
                  %387 = vst [vmem:[%s287 + $0x188] sm:$0xff] %v386
                  %v388 = vld [vmem:[%s286 + $0x320] sm:$0xff]
                  %389 = vst [vmem:[%s287 + $0x190] sm:$0xff] %v388
                  %v390 = vld [vmem:[%s286 + $0x330] sm:$0xff]
                  %391 = vst [vmem:[%s287 + $0x198] sm:$0xff] %v390
                  %v392 = vld [vmem:[%s286 + $0x340] sm:$0xff]
                  %393 = vst [vmem:[%s287 + $0x1a0] sm:$0xff] %v392
                  %v394 = vld [vmem:[%s286 + $0x350] sm:$0xff]
                  %395 = vst [vmem:[%s287 + $0x1a8] sm:$0xff] %v394
                  %v396 = vld [vmem:[%s286 + $0x360] sm:$0xff]
                  %397 = vst [vmem:[%s287 + $0x1b0] sm:$0xff] %v396
                  %v398 = vld [vmem:[%s286 + $0x370] sm:$0xff]
                  %399 = vst [vmem:[%s287 + $0x1b8] sm:$0xff] %v398
                  %v400 = vld [vmem:[%s286 + $0x380] sm:$0xff]
                  %401 = vst [vmem:[%s287 + $0x1c0] sm:$0xff] %v400
                  %v402 = vld [vmem:[%s286 + $0x390] sm:$0xff]
                  %403 = vst [vmem:[%s287 + $0x1c8] sm:$0xff] %v402
                  %v404 = vld [vmem:[%s286 + $0x3a0] sm:$0xff]
                  %405 = vst [vmem:[%s287 + $0x1d0] sm:$0xff] %v404
                  %v406 = vld [vmem:[%s286 + $0x3b0] sm:$0xff]
                  %407 = vst [vmem:[%s287 + $0x1d8] sm:$0xff] %v406
                  %v408 = vld [vmem:[%s286 + $0x3c0] sm:$0xff]
                  %409 = vst [vmem:[%s287 + $0x1e0] sm:$0xff] %v408
                  %v410 = vld [vmem:[%s286 + $0x3d0] sm:$0xff]
                  %411 = vst [vmem:[%s287 + $0x1e8] sm:$0xff] %v410
                  %v412 = vld [vmem:[%s286 + $0x3e0] sm:$0xff]
                  %413 = vst [vmem:[%s287 + $0x1f0] sm:$0xff] %v412
                  %v414 = vld [vmem:[%s286 + $0x3f0] sm:$0xff]
                  %415 = vst [vmem:[%s287 + $0x1f8] sm:$0xff] %v414
                $region52: #{tpu_custom_call.1} parent=46 // loop_footer
                  %s285 = sadd.s32 1, %s281
                $region53: #{tpu_custom_call.1} parent=46 // loop_footer_branch
                  %280 = sbr.rel target = $region49
                $region54: #{tpu_custom_call.1} parent=46 // loop_exit
                  _
              $region47: #{tpu_custom_call.1} parent=31 // pred_fallthru
                _
              // Predicated region
              $region55: #{tpu_custom_call.1} parent=31 // pred_check
                _
              $region56: #{tpu_custom_call.1} parent=31 // pred_check_branch
                %417 = sbr.rel target = $region58
              $region57: #{tpu_custom_call.1} parent=31 // pred_region
                _
              $region58: #{tpu_custom_call.1} parent=31 // pred_fallthru
                _
            $region32: #{tpu_custom_call.1} parent=27 // pred_fallthru
              _
            // Predicated region
            $region33: #{tpu_custom_call.1} parent=27 // pred_check
              _
            $region34: #{tpu_custom_call.1} parent=27 // pred_check_branch
              %139 = sbr.rel target = $region36
            $region35: #{tpu_custom_call.1} parent=27 // pred_region
              %s141 = ssub.s32 256, 1
              loop: start=0, step=1, limit=1
              $region37: #{tpu_custom_call.1} parent=35 // loop_pre_header
                _
              $region38: #{tpu_custom_call.1} parent=35 // loop_header
                %s143 = sphi 0, %s147
                %p144 = scmp.ge.s32.totalorder %s143, 1
                %s148 = sphi %s133, %s133
                %s149 = sphi %s131, %s131
              $region39: #{tpu_custom_call.1} parent=35 // loop_header_branch
                %146 = sbr.rel (%p144) target = $region43
              $region40: #{tpu_custom_call.1} parent=35 // loop_body
                %v150 = vld [vmem:[%s148] sm:%s141]
                %151 = vst [vmem:[%s149] sm:%s141] %v150
                %v152 = vld [vmem:[%s148 + $0x10] sm:%s141]
                %153 = vst [vmem:[%s149 + $0x8] sm:%s141] %v152
                %v154 = vld [vmem:[%s148 + $0x20] sm:%s141]
                %155 = vst [vmem:[%s149 + $0x10] sm:%s141] %v154
                %v156 = vld [vmem:[%s148 + $0x30] sm:%s141]
                %157 = vst [vmem:[%s149 + $0x18] sm:%s141] %v156
                %v158 = vld [vmem:[%s148 + $0x40] sm:%s141]
                %159 = vst [vmem:[%s149 + $0x20] sm:%s141] %v158
                %v160 = vld [vmem:[%s148 + $0x50] sm:%s141]
                %161 = vst [vmem:[%s149 + $0x28] sm:%s141] %v160
                %v162 = vld [vmem:[%s148 + $0x60] sm:%s141]
                %163 = vst [vmem:[%s149 + $0x30] sm:%s141] %v162
                %v164 = vld [vmem:[%s148 + $0x70] sm:%s141]
                %165 = vst [vmem:[%s149 + $0x38] sm:%s141] %v164
                %v166 = vld [vmem:[%s148 + $0x80] sm:%s141]
                %167 = vst [vmem:[%s149 + $0x40] sm:%s141] %v166
                %v168 = vld [vmem:[%s148 + $0x90] sm:%s141]
                %169 = vst [vmem:[%s149 + $0x48] sm:%s141] %v168
                %v170 = vld [vmem:[%s148 + $0xa0] sm:%s141]
                %171 = vst [vmem:[%s149 + $0x50] sm:%s141] %v170
                %v172 = vld [vmem:[%s148 + $0xb0] sm:%s141]
                %173 = vst [vmem:[%s149 + $0x58] sm:%s141] %v172
                %v174 = vld [vmem:[%s148 + $0xc0] sm:%s141]
                %175 = vst [vmem:[%s149 + $0x60] sm:%s141] %v174
                %v176 = vld [vmem:[%s148 + $0xd0] sm:%s141]
                %177 = vst [vmem:[%s149 + $0x68] sm:%s141] %v176
                %v178 = vld [vmem:[%s148 + $0xe0] sm:%s141]
                %179 = vst [vmem:[%s149 + $0x70] sm:%s141] %v178
                %v180 = vld [vmem:[%s148 + $0xf0] sm:%s141]
                %181 = vst [vmem:[%s149 + $0x78] sm:%s141] %v180
                %v182 = vld [vmem:[%s148 + $0x100] sm:%s141]
                %183 = vst [vmem:[%s149 + $0x80] sm:%s141] %v182
                %v184 = vld [vmem:[%s148 + $0x110] sm:%s141]
                %185 = vst [vmem:[%s149 + $0x88] sm:%s141] %v184
                %v186 = vld [vmem:[%s148 + $0x120] sm:%s141]
                %187 = vst [vmem:[%s149 + $0x90] sm:%s141] %v186
                %v188 = vld [vmem:[%s148 + $0x130] sm:%s141]
                %189 = vst [vmem:[%s149 + $0x98] sm:%s141] %v188
                %v190 = vld [vmem:[%s148 + $0x140] sm:%s141]
                %191 = vst [vmem:[%s149 + $0xa0] sm:%s141] %v190
                %v192 = vld [vmem:[%s148 + $0x150] sm:%s141]
                %193 = vst [vmem:[%s149 + $0xa8] sm:%s141] %v192
                %v194 = vld [vmem:[%s148 + $0x160] sm:%s141]
                %195 = vst [vmem:[%s149 + $0xb0] sm:%s141] %v194
                %v196 = vld [vmem:[%s148 + $0x170] sm:%s141]
                %197 = vst [vmem:[%s149 + $0xb8] sm:%s141] %v196
                %v198 = vld [vmem:[%s148 + $0x180] sm:%s141]
                %199 = vst [vmem:[%s149 + $0xc0] sm:%s141] %v198
                %v200 = vld [vmem:[%s148 + $0x190] sm:%s141]
                %201 = vst [vmem:[%s149 + $0xc8] sm:%s141] %v200
                %v202 = vld [vmem:[%s148 + $0x1a0] sm:%s141]
                %203 = vst [vmem:[%s149 + $0xd0] sm:%s141] %v202
                %v204 = vld [vmem:[%s148 + $0x1b0] sm:%s141]
                %205 = vst [vmem:[%s149 + $0xd8] sm:%s141] %v204
                %v206 = vld [vmem:[%s148 + $0x1c0] sm:%s141]
                %207 = vst [vmem:[%s149 + $0xe0] sm:%s141] %v206
                %v208 = vld [vmem:[%s148 + $0x1d0] sm:%s141]
                %209 = vst [vmem:[%s149 + $0xe8] sm:%s141] %v208
                %v210 = vld [vmem:[%s148 + $0x1e0] sm:%s141]
                %211 = vst [vmem:[%s149 + $0xf0] sm:%s141] %v210
                %v212 = vld [vmem:[%s148 + $0x1f0] sm:%s141]
                %213 = vst [vmem:[%s149 + $0xf8] sm:%s141] %v212
                %v214 = vld [vmem:[%s148 + $0x200] sm:%s141]
                %215 = vst [vmem:[%s149 + $0x100] sm:%s141] %v214
                %v216 = vld [vmem:[%s148 + $0x210] sm:%s141]
                %217 = vst [vmem:[%s149 + $0x108] sm:%s141] %v216
                %v218 = vld [vmem:[%s148 + $0x220] sm:%s141]
                %219 = vst [vmem:[%s149 + $0x110] sm:%s141] %v218
                %v220 = vld [vmem:[%s148 + $0x230] sm:%s141]
                %221 = vst [vmem:[%s149 + $0x118] sm:%s141] %v220
                %v222 = vld [vmem:[%s148 + $0x240] sm:%s141]
                %223 = vst [vmem:[%s149 + $0x120] sm:%s141] %v222
                %v224 = vld [vmem:[%s148 + $0x250] sm:%s141]
                %225 = vst [vmem:[%s149 + $0x128] sm:%s141] %v224
                %v226 = vld [vmem:[%s148 + $0x260] sm:%s141]
                %227 = vst [vmem:[%s149 + $0x130] sm:%s141] %v226
                %v228 = vld [vmem:[%s148 + $0x270] sm:%s141]
                %229 = vst [vmem:[%s149 + $0x138] sm:%s141] %v228
                %v230 = vld [vmem:[%s148 + $0x280] sm:%s141]
                %231 = vst [vmem:[%s149 + $0x140] sm:%s141] %v230
                %v232 = vld [vmem:[%s148 + $0x290] sm:%s141]
                %233 = vst [vmem:[%s149 + $0x148] sm:%s141] %v232
                %v234 = vld [vmem:[%s148 + $0x2a0] sm:%s141]
                %235 = vst [vmem:[%s149 + $0x150] sm:%s141] %v234
                %v236 = vld [vmem:[%s148 + $0x2b0] sm:%s141]
                %237 = vst [vmem:[%s149 + $0x158] sm:%s141] %v236
                %v238 = vld [vmem:[%s148 + $0x2c0] sm:%s141]
                %239 = vst [vmem:[%s149 + $0x160] sm:%s141] %v238
                %v240 = vld [vmem:[%s148 + $0x2d0] sm:%s141]
                %241 = vst [vmem:[%s149 + $0x168] sm:%s141] %v240
                %v242 = vld [vmem:[%s148 + $0x2e0] sm:%s141]
                %243 = vst [vmem:[%s149 + $0x170] sm:%s141] %v242
                %v244 = vld [vmem:[%s148 + $0x2f0] sm:%s141]
                %245 = vst [vmem:[%s149 + $0x178] sm:%s141] %v244
                %v246 = vld [vmem:[%s148 + $0x300] sm:%s141]
                %247 = vst [vmem:[%s149 + $0x180] sm:%s141] %v246
                %v248 = vld [vmem:[%s148 + $0x310] sm:%s141]
                %249 = vst [vmem:[%s149 + $0x188] sm:%s141] %v248
                %v250 = vld [vmem:[%s148 + $0x320] sm:%s141]
                %251 = vst [vmem:[%s149 + $0x190] sm:%s141] %v250
                %v252 = vld [vmem:[%s148 + $0x330] sm:%s141]
                %253 = vst [vmem:[%s149 + $0x198] sm:%s141] %v252
                %v254 = vld [vmem:[%s148 + $0x340] sm:%s141]
                %255 = vst [vmem:[%s149 + $0x1a0] sm:%s141] %v254
                %v256 = vld [vmem:[%s148 + $0x350] sm:%s141]
                %257 = vst [vmem:[%s149 + $0x1a8] sm:%s141] %v256
                %v258 = vld [vmem:[%s148 + $0x360] sm:%s141]
                %259 = vst [vmem:[%s149 + $0x1b0] sm:%s141] %v258
                %v260 = vld [vmem:[%s148 + $0x370] sm:%s141]
                %261 = vst [vmem:[%s149 + $0x1b8] sm:%s141] %v260
                %v262 = vld [vmem:[%s148 + $0x380] sm:%s141]
                %263 = vst [vmem:[%s149 + $0x1c0] sm:%s141] %v262
                %v264 = vld [vmem:[%s148 + $0x390] sm:%s141]
                %265 = vst [vmem:[%s149 + $0x1c8] sm:%s141] %v264
                %v266 = vld [vmem:[%s148 + $0x3a0] sm:%s141]
                %267 = vst [vmem:[%s149 + $0x1d0] sm:%s141] %v266
                %v268 = vld [vmem:[%s148 + $0x3b0] sm:%s141]
                %269 = vst [vmem:[%s149 + $0x1d8] sm:%s141] %v268
                %v270 = vld [vmem:[%s148 + $0x3c0] sm:%s141]
                %271 = vst [vmem:[%s149 + $0x1e0] sm:%s141] %v270
                %v272 = vld [vmem:[%s148 + $0x3d0] sm:%s141]
                %273 = vst [vmem:[%s149 + $0x1e8] sm:%s141] %v272
                %v274 = vld [vmem:[%s148 + $0x3e0] sm:%s141]
                %275 = vst [vmem:[%s149 + $0x1f0] sm:%s141] %v274
                %v276 = vld [vmem:[%s148 + $0x3f0] sm:%s141]
                %277 = vst [vmem:[%s149 + $0x1f8] sm:%s141] %v276
              $region41: #{tpu_custom_call.1} parent=35 // loop_footer
                %s147 = sadd.s32 1, %s143
              $region42: #{tpu_custom_call.1} parent=35 // loop_footer_branch
                %142 = sbr.rel target = $region38
              $region43: #{tpu_custom_call.1} parent=35 // loop_exit
                _
            $region36: #{tpu_custom_call.1} parent=27 // pred_fallthru
              _
          $region28: #{tpu_custom_call.1} parent=23 // pred_fallthru
            _
          %418 = vnop
        $region24: #{tpu_custom_call.1} parent=19 // pred_fallthru
          _
      $region20: #{tpu_custom_call.1} parent=5 // pred_fallthru
        _
      %p419 = scmp.le.s32.totalorder 1, %s8
      %p420 = scmp.lt.s32.totalorder %s8, 3
      %p421 = pnand %p419, %p420
      %p422 = pneg %p421
      // Predicated region
      $region59: #{tpu_custom_call.1} parent=5 // pred_check
        _
      $region60: #{tpu_custom_call.1} parent=5 // pred_check_branch
        %424 = sbr.rel (%p421) target = $region62
      $region61: #{tpu_custom_call.1} parent=5 // pred_region
        %s425 = ssub.s32 %s8, 1
        %s426 = sand.u32 %s33, 1
        %s427 = sand.u32 %s33, 1
        %s428 = smul.addr %s427, 512
        %s429 = scalar_lea.vmem [#allocation2], %s428
        // Predicated region
        $region63: #{tpu_custom_call.1} parent=61 // pred_check
          %p430 = pneg %p46
        $region64: #{tpu_custom_call.1} parent=61 // pred_check_branch
          %432 = sbr.rel (%p430) target = $region66
        $region65: #{tpu_custom_call.1} parent=61 // pred_region
          _
        $region66: #{tpu_custom_call.1} parent=61 // pred_fallthru
          _
        %s433 = sand.u32 %s33, 1
        %s434 = sand.u32 %s33, 1
        %s435 = smul.addr %s434, 512
        %s436 = scalar_lea.vmem [#allocation2], %s435
        %p437 = pneg %p46
        %p438 = pneg %p43
        %p439 = scmp.lt.s32.totalorder %s18, 0
        %s440 = scalar_select %p439, %s18, 0
        %s441 = scalar_lea.vmem %s1, %s440
        %p442 = pneg %p72
        %p443 = pneg %p69
        %p444 = pneg %p100
        %p445 = pneg %p97
        %s446 = sand.u32 %s87, 1
        %s447 = sand.u32 %s87, 1
        %s448 = smul.addr %s447, 1024
        %s449 = scalar_lea.vmem [#allocation3], %s448
        %p450 = scmp.lt.s32.totalorder %s18, 0
        %s451 = scalar_select %p450, %s18, 0
        %s452 = scalar_lea.vmem %s1, %s451
        %v453 = vld [vmem:[%s429] sm:$0xff]
        %v454 = vld [vmem:[%s429 + $0x8] sm:$0xff]
        %v455 = vld [vmem:[%s429 + $0x10] sm:$0xff]
        %v456 = vld [vmem:[%s429 + $0x18] sm:$0xff]
        %v457 = vld [vmem:[%s429 + $0x20] sm:$0xff]
        %v458 = vld [vmem:[%s429 + $0x28] sm:$0xff]
        %v459 = vld [vmem:[%s429 + $0x30] sm:$0xff]
        %v460 = vld [vmem:[%s429 + $0x38] sm:$0xff]
        %v461 = vld [vmem:[%s429 + $0x40] sm:$0xff]
        %v462 = vld [vmem:[%s429 + $0x48] sm:$0xff]
        %v463 = vld [vmem:[%s429 + $0x50] sm:$0xff]
        %v464 = vld [vmem:[%s429 + $0x58] sm:$0xff]
        %v465 = vld [vmem:[%s429 + $0x60] sm:$0xff]
        %v466 = vld [vmem:[%s429 + $0x68] sm:$0xff]
        %v467 = vld [vmem:[%s429 + $0x70] sm:$0xff]
        %v468 = vld [vmem:[%s429 + $0x78] sm:$0xff]
        %v469 = vld [vmem:[%s429 + $0x80] sm:$0xff]
        %v470 = vld [vmem:[%s429 + $0x88] sm:$0xff]
        %v471 = vld [vmem:[%s429 + $0x90] sm:$0xff]
        %v472 = vld [vmem:[%s429 + $0x98] sm:$0xff]
        %v473 = vld [vmem:[%s429 + $0xa0] sm:$0xff]
        %v474 = vld [vmem:[%s429 + $0xa8] sm:$0xff]
        %v475 = vld [vmem:[%s429 + $0xb0] sm:$0xff]
        %v476 = vld [vmem:[%s429 + $0xb8] sm:$0xff]
        %v477 = vld [vmem:[%s429 + $0xc0] sm:$0xff]
        %v478 = vld [vmem:[%s429 + $0xc8] sm:$0xff]
        %v479 = vld [vmem:[%s429 + $0xd0] sm:$0xff]
        %v480 = vld [vmem:[%s429 + $0xd8] sm:$0xff]
        %v481 = vld [vmem:[%s429 + $0xe0] sm:$0xff]
        %v482 = vld [vmem:[%s429 + $0xe8] sm:$0xff]
        %v483 = vld [vmem:[%s429 + $0xf0] sm:$0xff]
        %v484 = vld [vmem:[%s429 + $0xf8] sm:$0xff]
        %v485 = vld [vmem:[%s429 + $0x100] sm:$0xff]
        %v486 = vld [vmem:[%s429 + $0x108] sm:$0xff]
        %v487 = vld [vmem:[%s429 + $0x110] sm:$0xff]
        %v488 = vld [vmem:[%s429 + $0x118] sm:$0xff]
        %v489 = vld [vmem:[%s429 + $0x120] sm:$0xff]
        %v490 = vld [vmem:[%s429 + $0x128] sm:$0xff]
        %v491 = vld [vmem:[%s429 + $0x130] sm:$0xff]
        %v492 = vld [vmem:[%s429 + $0x138] sm:$0xff]
        %v493 = vld [vmem:[%s429 + $0x140] sm:$0xff]
        %v494 = vld [vmem:[%s429 + $0x148] sm:$0xff]
        %v495 = vld [vmem:[%s429 + $0x150] sm:$0xff]
        %v496 = vld [vmem:[%s429 + $0x158] sm:$0xff]
        %v497 = vld [vmem:[%s429 + $0x160] sm:$0xff]
        %v498 = vld [vmem:[%s429 + $0x168] sm:$0xff]
        %v499 = vld [vmem:[%s429 + $0x170] sm:$0xff]
        %v500 = vld [vmem:[%s429 + $0x178] sm:$0xff]
        %v501 = vld [vmem:[%s429 + $0x180] sm:$0xff]
        %v502 = vld [vmem:[%s429 + $0x188] sm:$0xff]
        %v503 = vld [vmem:[%s429 + $0x190] sm:$0xff]
        %v504 = vld [vmem:[%s429 + $0x198] sm:$0xff]
        %v505 = vld [vmem:[%s429 + $0x1a0] sm:$0xff]
        %v506 = vld [vmem:[%s429 + $0x1a8] sm:$0xff]
        %v507 = vld [vmem:[%s429 + $0x1b0] sm:$0xff]
        %v508 = vld [vmem:[%s429 + $0x1b8] sm:$0xff]
        %v509 = vld [vmem:[%s429 + $0x1c0] sm:$0xff]
        %v510 = vld [vmem:[%s429 + $0x1c8] sm:$0xff]
        %v511 = vld [vmem:[%s429 + $0x1d0] sm:$0xff]
        %v512 = vld [vmem:[%s429 + $0x1d8] sm:$0xff]
        %v513 = vld [vmem:[%s429 + $0x1e0] sm:$0xff]
        %v514 = vld [vmem:[%s429 + $0x1e8] sm:$0xff]
        %v515 = vld [vmem:[%s429 + $0x1f0] sm:$0xff]
        %v516 = vld [vmem:[%s429 + $0x1f8] sm:$0xff]
        %518 = vset.pattern.permute.xlu0 0
        %519 = vperm.xlu0 %518, %v453
        %v520 = vpop.permute.xlu0 %519
        %523 = vset.pattern.permute.xlu0 0
        %524 = vperm.xlu0 %523, %v454
        %v525 = vpop.permute.xlu0 %524
        %528 = vset.pattern.permute.xlu0 0
        %529 = vperm.xlu0 %528, %v455
        %v530 = vpop.permute.xlu0 %529
        %533 = vset.pattern.permute.xlu0 0
        %534 = vperm.xlu0 %533, %v456
        %v535 = vpop.permute.xlu0 %534
        %538 = vset.pattern.permute.xlu0 0
        %539 = vperm.xlu0 %538, %v457
        %v540 = vpop.permute.xlu0 %539
        %543 = vset.pattern.permute.xlu0 0
        %544 = vperm.xlu0 %543, %v458
        %v545 = vpop.permute.xlu0 %544
        %548 = vset.pattern.permute.xlu0 0
        %549 = vperm.xlu0 %548, %v459
        %v550 = vpop.permute.xlu0 %549
        %553 = vset.pattern.permute.xlu0 0
        %554 = vperm.xlu0 %553, %v460
        %v555 = vpop.permute.xlu0 %554
        %558 = vset.pattern.permute.xlu0 0
        %559 = vperm.xlu0 %558, %v461
        %v560 = vpop.permute.xlu0 %559
        %563 = vset.pattern.permute.xlu0 0
        %564 = vperm.xlu0 %563, %v462
        %v565 = vpop.permute.xlu0 %564
        %568 = vset.pattern.permute.xlu0 0
        %569 = vperm.xlu0 %568, %v463
        %v570 = vpop.permute.xlu0 %569
        %573 = vset.pattern.permute.xlu0 0
        %574 = vperm.xlu0 %573, %v464
        %v575 = vpop.permute.xlu0 %574
        %578 = vset.pattern.permute.xlu0 0
        %579 = vperm.xlu0 %578, %v465
        %v580 = vpop.permute.xlu0 %579
        %583 = vset.pattern.permute.xlu0 0
        %584 = vperm.xlu0 %583, %v466
        %v585 = vpop.permute.xlu0 %584
        %588 = vset.pattern.permute.xlu0 0
        %589 = vperm.xlu0 %588, %v467
        %v590 = vpop.permute.xlu0 %589
        %593 = vset.pattern.permute.xlu0 0
        %594 = vperm.xlu0 %593, %v468
        %v595 = vpop.permute.xlu0 %594
        %598 = vset.pattern.permute.xlu0 0
        %599 = vperm.xlu0 %598, %v469
        %v600 = vpop.permute.xlu0 %599
        %603 = vset.pattern.permute.xlu0 0
        %604 = vperm.xlu0 %603, %v470
        %v605 = vpop.permute.xlu0 %604
        %608 = vset.pattern.permute.xlu0 0
        %609 = vperm.xlu0 %608, %v471
        %v610 = vpop.permute.xlu0 %609
        %613 = vset.pattern.permute.xlu0 0
        %614 = vperm.xlu0 %613, %v472
        %v615 = vpop.permute.xlu0 %614
        %618 = vset.pattern.permute.xlu0 0
        %619 = vperm.xlu0 %618, %v473
        %v620 = vpop.permute.xlu0 %619
        %623 = vset.pattern.permute.xlu0 0
        %624 = vperm.xlu0 %623, %v474
        %v625 = vpop.permute.xlu0 %624
        %628 = vset.pattern.permute.xlu0 0
        %629 = vperm.xlu0 %628, %v475
        %v630 = vpop.permute.xlu0 %629
        %633 = vset.pattern.permute.xlu0 0
        %634 = vperm.xlu0 %633, %v476
        %v635 = vpop.permute.xlu0 %634
        %638 = vset.pattern.permute.xlu0 0
        %639 = vperm.xlu0 %638, %v477
        %v640 = vpop.permute.xlu0 %639
        %643 = vset.pattern.permute.xlu0 0
        %644 = vperm.xlu0 %643, %v478
        %v645 = vpop.permute.xlu0 %644
        %648 = vset.pattern.permute.xlu0 0
        %649 = vperm.xlu0 %648, %v479
        %v650 = vpop.permute.xlu0 %649
        %653 = vset.pattern.permute.xlu0 0
        %654 = vperm.xlu0 %653, %v480
        %v655 = vpop.permute.xlu0 %654
        %658 = vset.pattern.permute.xlu0 0
        %659 = vperm.xlu0 %658, %v481
        %v660 = vpop.permute.xlu0 %659
        %663 = vset.pattern.permute.xlu0 0
        %664 = vperm.xlu0 %663, %v482
        %v665 = vpop.permute.xlu0 %664
        %668 = vset.pattern.permute.xlu0 0
        %669 = vperm.xlu0 %668, %v483
        %v670 = vpop.permute.xlu0 %669
        %673 = vset.pattern.permute.xlu0 0
        %674 = vperm.xlu0 %673, %v484
        %v675 = vpop.permute.xlu0 %674
        %678 = vset.pattern.permute.xlu0 0
        %679 = vperm.xlu0 %678, %v485
        %v680 = vpop.permute.xlu0 %679
        %683 = vset.pattern.permute.xlu0 0
        %684 = vperm.xlu0 %683, %v486
        %v685 = vpop.permute.xlu0 %684
        %688 = vset.pattern.permute.xlu0 0
        %689 = vperm.xlu0 %688, %v487
        %v690 = vpop.permute.xlu0 %689
        %693 = vset.pattern.permute.xlu0 0
        %694 = vperm.xlu0 %693, %v488
        %v695 = vpop.permute.xlu0 %694
        %698 = vset.pattern.permute.xlu0 0
        %699 = vperm.xlu0 %698, %v489
        %v700 = vpop.permute.xlu0 %699
        %703 = vset.pattern.permute.xlu0 0
        %704 = vperm.xlu0 %703, %v490
        %v705 = vpop.permute.xlu0 %704
        %708 = vset.pattern.permute.xlu0 0
        %709 = vperm.xlu0 %708, %v491
        %v710 = vpop.permute.xlu0 %709
        %713 = vset.pattern.permute.xlu0 0
        %714 = vperm.xlu0 %713, %v492
        %v715 = vpop.permute.xlu0 %714
        %718 = vset.pattern.permute.xlu0 0
        %719 = vperm.xlu0 %718, %v493
        %v720 = vpop.permute.xlu0 %719
        %723 = vset.pattern.permute.xlu0 0
        %724 = vperm.xlu0 %723, %v494
        %v725 = vpop.permute.xlu0 %724
        %728 = vset.pattern.permute.xlu0 0
        %729 = vperm.xlu0 %728, %v495
        %v730 = vpop.permute.xlu0 %729
        %733 = vset.pattern.permute.xlu0 0
        %734 = vperm.xlu0 %733, %v496
        %v735 = vpop.permute.xlu0 %734
        %738 = vset.pattern.permute.xlu0 0
        %739 = vperm.xlu0 %738, %v497
        %v740 = vpop.permute.xlu0 %739
        %743 = vset.pattern.permute.xlu0 0
        %744 = vperm.xlu0 %743, %v498
        %v745 = vpop.permute.xlu0 %744
        %748 = vset.pattern.permute.xlu0 0
        %749 = vperm.xlu0 %748, %v499
        %v750 = vpop.permute.xlu0 %749
        %753 = vset.pattern.permute.xlu0 0
        %754 = vperm.xlu0 %753, %v500
        %v755 = vpop.permute.xlu0 %754
        %758 = vset.pattern.permute.xlu0 0
        %759 = vperm.xlu0 %758, %v501
        %v760 = vpop.permute.xlu0 %759
        %763 = vset.pattern.permute.xlu0 0
        %764 = vperm.xlu0 %763, %v502
        %v765 = vpop.permute.xlu0 %764
        %768 = vset.pattern.permute.xlu0 0
        %769 = vperm.xlu0 %768, %v503
        %v770 = vpop.permute.xlu0 %769
        %773 = vset.pattern.permute.xlu0 0
        %774 = vperm.xlu0 %773, %v504
        %v775 = vpop.permute.xlu0 %774
        %778 = vset.pattern.permute.xlu0 0
        %779 = vperm.xlu0 %778, %v505
        %v780 = vpop.permute.xlu0 %779
        %783 = vset.pattern.permute.xlu0 0
        %784 = vperm.xlu0 %783, %v506
        %v785 = vpop.permute.xlu0 %784
        %788 = vset.pattern.permute.xlu0 0
        %789 = vperm.xlu0 %788, %v507
        %v790 = vpop.permute.xlu0 %789
        %793 = vset.pattern.permute.xlu0 0
        %794 = vperm.xlu0 %793, %v508
        %v795 = vpop.permute.xlu0 %794
        %798 = vset.pattern.permute.xlu0 0
        %799 = vperm.xlu0 %798, %v509
        %v800 = vpop.permute.xlu0 %799
        %803 = vset.pattern.permute.xlu0 0
        %804 = vperm.xlu0 %803, %v510
        %v805 = vpop.permute.xlu0 %804
        %808 = vset.pattern.permute.xlu0 0
        %809 = vperm.xlu0 %808, %v511
        %v810 = vpop.permute.xlu0 %809
        %813 = vset.pattern.permute.xlu0 0
        %814 = vperm.xlu0 %813, %v512
        %v815 = vpop.permute.xlu0 %814
        %818 = vset.pattern.permute.xlu0 0
        %819 = vperm.xlu0 %818, %v513
        %v820 = vpop.permute.xlu0 %819
        %823 = vset.pattern.permute.xlu0 0
        %824 = vperm.xlu0 %823, %v514
        %v825 = vpop.permute.xlu0 %824
        %828 = vset.pattern.permute.xlu0 0
        %829 = vperm.xlu0 %828, %v515
        %v830 = vpop.permute.xlu0 %829
        %833 = vset.pattern.permute.xlu0 0
        %834 = vperm.xlu0 %833, %v516
        %v835 = vpop.permute.xlu0 %834
        %vm837 = vcmask 130048
        %838 = vst.msk [vmem:[%s449] sm:$0xff] %vm837, %v520
        %839 = vst.msk [vmem:[%s449 + $0x8] sm:$0xff] %vm837, %v525
        %840 = vst.msk [vmem:[%s449 + $0x10] sm:$0xff] %vm837, %v530
        %841 = vst.msk [vmem:[%s449 + $0x18] sm:$0xff] %vm837, %v535
        %842 = vst.msk [vmem:[%s449 + $0x20] sm:$0xff] %vm837, %v540
        %843 = vst.msk [vmem:[%s449 + $0x28] sm:$0xff] %vm837, %v545
        %844 = vst.msk [vmem:[%s449 + $0x30] sm:$0xff] %vm837, %v550
        %845 = vst.msk [vmem:[%s449 + $0x38] sm:$0xff] %vm837, %v555
        %846 = vst.msk [vmem:[%s449 + $0x40] sm:$0xff] %vm837, %v560
        %847 = vst.msk [vmem:[%s449 + $0x48] sm:$0xff] %vm837, %v565
        %848 = vst.msk [vmem:[%s449 + $0x50] sm:$0xff] %vm837, %v570
        %849 = vst.msk [vmem:[%s449 + $0x58] sm:$0xff] %vm837, %v575
        %850 = vst.msk [vmem:[%s449 + $0x60] sm:$0xff] %vm837, %v580
        %851 = vst.msk [vmem:[%s449 + $0x68] sm:$0xff] %vm837, %v585
        %852 = vst.msk [vmem:[%s449 + $0x70] sm:$0xff] %vm837, %v590
        %853 = vst.msk [vmem:[%s449 + $0x78] sm:$0xff] %vm837, %v595
        %854 = vst.msk [vmem:[%s449 + $0x80] sm:$0xff] %vm837, %v600
        %855 = vst.msk [vmem:[%s449 + $0x88] sm:$0xff] %vm837, %v605
        %856 = vst.msk [vmem:[%s449 + $0x90] sm:$0xff] %vm837, %v610
        %857 = vst.msk [vmem:[%s449 + $0x98] sm:$0xff] %vm837, %v615
        %858 = vst.msk [vmem:[%s449 + $0xa0] sm:$0xff] %vm837, %v620
        %859 = vst.msk [vmem:[%s449 + $0xa8] sm:$0xff] %vm837, %v625
        %860 = vst.msk [vmem:[%s449 + $0xb0] sm:$0xff] %vm837, %v630
        %861 = vst.msk [vmem:[%s449 + $0xb8] sm:$0xff] %vm837, %v635
        %862 = vst.msk [vmem:[%s449 + $0xc0] sm:$0xff] %vm837, %v640
        %863 = vst.msk [vmem:[%s449 + $0xc8] sm:$0xff] %vm837, %v645
        %864 = vst.msk [vmem:[%s449 + $0xd0] sm:$0xff] %vm837, %v650
        %865 = vst.msk [vmem:[%s449 + $0xd8] sm:$0xff] %vm837, %v655
        %866 = vst.msk [vmem:[%s449 + $0xe0] sm:$0xff] %vm837, %v660
        %867 = vst.msk [vmem:[%s449 + $0xe8] sm:$0xff] %vm837, %v665
        %868 = vst.msk [vmem:[%s449 + $0xf0] sm:$0xff] %vm837, %v670
        %869 = vst.msk [vmem:[%s449 + $0xf8] sm:$0xff] %vm837, %v675
        %870 = vst.msk [vmem:[%s449 + $0x100] sm:$0xff] %vm837, %v680
        %871 = vst.msk [vmem:[%s449 + $0x108] sm:$0xff] %vm837, %v685
        %872 = vst.msk [vmem:[%s449 + $0x110] sm:$0xff] %vm837, %v690
        %873 = vst.msk [vmem:[%s449 + $0x118] sm:$0xff] %vm837, %v695
        %874 = vst.msk [vmem:[%s449 + $0x120] sm:$0xff] %vm837, %v700
        %875 = vst.msk [vmem:[%s449 + $0x128] sm:$0xff] %vm837, %v705
        %876 = vst.msk [vmem:[%s449 + $0x130] sm:$0xff] %vm837, %v710
        %877 = vst.msk [vmem:[%s449 + $0x138] sm:$0xff] %vm837, %v715
        %878 = vst.msk [vmem:[%s449 + $0x140] sm:$0xff] %vm837, %v720
        %879 = vst.msk [vmem:[%s449 + $0x148] sm:$0xff] %vm837, %v725
        %880 = vst.msk [vmem:[%s449 + $0x150] sm:$0xff] %vm837, %v730
        %881 = vst.msk [vmem:[%s449 + $0x158] sm:$0xff] %vm837, %v735
        %882 = vst.msk [vmem:[%s449 + $0x160] sm:$0xff] %vm837, %v740
        %883 = vst.msk [vmem:[%s449 + $0x168] sm:$0xff] %vm837, %v745
        %884 = vst.msk [vmem:[%s449 + $0x170] sm:$0xff] %vm837, %v750
        %885 = vst.msk [vmem:[%s449 + $0x178] sm:$0xff] %vm837, %v755
        %886 = vst.msk [vmem:[%s449 + $0x180] sm:$0xff] %vm837, %v760
        %887 = vst.msk [vmem:[%s449 + $0x188] sm:$0xff] %vm837, %v765
        %888 = vst.msk [vmem:[%s449 + $0x190] sm:$0xff] %vm837, %v770
        %889 = vst.msk [vmem:[%s449 + $0x198] sm:$0xff] %vm837, %v775
        %890 = vst.msk [vmem:[%s449 + $0x1a0] sm:$0xff] %vm837, %v780
        %891 = vst.msk [vmem:[%s449 + $0x1a8] sm:$0xff] %vm837, %v785
        %892 = vst.msk [vmem:[%s449 + $0x1b0] sm:$0xff] %vm837, %v790
        %893 = vst.msk [vmem:[%s449 + $0x1b8] sm:$0xff] %vm837, %v795
        %894 = vst.msk [vmem:[%s449 + $0x1c0] sm:$0xff] %vm837, %v800
        %895 = vst.msk [vmem:[%s449 + $0x1c8] sm:$0xff] %vm837, %v805
        %896 = vst.msk [vmem:[%s449 + $0x1d0] sm:$0xff] %vm837, %v810
        %897 = vst.msk [vmem:[%s449 + $0x1d8] sm:$0xff] %vm837, %v815
        %898 = vst.msk [vmem:[%s449 + $0x1e0] sm:$0xff] %vm837, %v820
        %899 = vst.msk [vmem:[%s449 + $0x1e8] sm:$0xff] %vm837, %v825
        %900 = vst.msk [vmem:[%s449 + $0x1f0] sm:$0xff] %vm837, %v830
        %901 = vst.msk [vmem:[%s449 + $0x1f8] sm:$0xff] %vm837, %v835
        %v902 = vld [vmem:[%s452] sm:$0x1]
        %v903 = vld [vmem:[%s452 + $0x1] sm:$0x1]
        %v904 = vld [vmem:[%s452 + $0x2] sm:$0x1]
        %v905 = vld [vmem:[%s452 + $0x3] sm:$0x1]
        %v906 = vld [vmem:[%s452 + $0x4] sm:$0x1]
        %v907 = vld [vmem:[%s452 + $0x5] sm:$0x1]
        %v908 = vld [vmem:[%s452 + $0x6] sm:$0x1]
        %v909 = vld [vmem:[%s452 + $0x7] sm:$0x1]
        %v910 = vld [vmem:[%s452 + $0x8] sm:$0x1]
        %v911 = vld [vmem:[%s452 + $0x9] sm:$0x1]
        %v912 = vld [vmem:[%s452 + $0xa] sm:$0x1]
        %v913 = vld [vmem:[%s452 + $0xb] sm:$0x1]
        %v914 = vld [vmem:[%s452 + $0xc] sm:$0x1]
        %v915 = vld [vmem:[%s452 + $0xd] sm:$0x1]
        %v916 = vld [vmem:[%s452 + $0xe] sm:$0x1]
        %v917 = vld [vmem:[%s452 + $0xf] sm:$0x1]
        %v918 = vld [vmem:[%s452 + $0x10] sm:$0x1]
        %v919 = vld [vmem:[%s452 + $0x11] sm:$0x1]
        %v920 = vld [vmem:[%s452 + $0x12] sm:$0x1]
        %v921 = vld [vmem:[%s452 + $0x13] sm:$0x1]
        %v922 = vld [vmem:[%s452 + $0x14] sm:$0x1]
        %v923 = vld [vmem:[%s452 + $0x15] sm:$0x1]
        %v924 = vld [vmem:[%s452 + $0x16] sm:$0x1]
        %v925 = vld [vmem:[%s452 + $0x17] sm:$0x1]
        %v926 = vld [vmem:[%s452 + $0x18] sm:$0x1]
        %v927 = vld [vmem:[%s452 + $0x19] sm:$0x1]
        %v928 = vld [vmem:[%s452 + $0x1a] sm:$0x1]
        %v929 = vld [vmem:[%s452 + $0x1b] sm:$0x1]
        %v930 = vld [vmem:[%s452 + $0x1c] sm:$0x1]
        %v931 = vld [vmem:[%s452 + $0x1d] sm:$0x1]
        %v932 = vld [vmem:[%s452 + $0x1e] sm:$0x1]
        %v933 = vld [vmem:[%s452 + $0x1f] sm:$0x1]
        %v934 = vld [vmem:[%s452 + $0x20] sm:$0x1]
        %v935 = vld [vmem:[%s452 + $0x21] sm:$0x1]
        %v936 = vld [vmem:[%s452 + $0x22] sm:$0x1]
        %v937 = vld [vmem:[%s452 + $0x23] sm:$0x1]
        %v938 = vld [vmem:[%s452 + $0x24] sm:$0x1]
        %v939 = vld [vmem:[%s452 + $0x25] sm:$0x1]
        %v940 = vld [vmem:[%s452 + $0x26] sm:$0x1]
        %v941 = vld [vmem:[%s452 + $0x27] sm:$0x1]
        %v942 = vld [vmem:[%s452 + $0x28] sm:$0x1]
        %v943 = vld [vmem:[%s452 + $0x29] sm:$0x1]
        %v944 = vld [vmem:[%s452 + $0x2a] sm:$0x1]
        %v945 = vld [vmem:[%s452 + $0x2b] sm:$0x1]
        %v946 = vld [vmem:[%s452 + $0x2c] sm:$0x1]
        %v947 = vld [vmem:[%s452 + $0x2d] sm:$0x1]
        %v948 = vld [vmem:[%s452 + $0x2e] sm:$0x1]
        %v949 = vld [vmem:[%s452 + $0x2f] sm:$0x1]
        %v950 = vld [vmem:[%s452 + $0x30] sm:$0x1]
        %v951 = vld [vmem:[%s452 + $0x31] sm:$0x1]
        %v952 = vld [vmem:[%s452 + $0x32] sm:$0x1]
        %v953 = vld [vmem:[%s452 + $0x33] sm:$0x1]
        %v954 = vld [vmem:[%s452 + $0x34] sm:$0x1]
        %v955 = vld [vmem:[%s452 + $0x35] sm:$0x1]
        %v956 = vld [vmem:[%s452 + $0x36] sm:$0x1]
        %v957 = vld [vmem:[%s452 + $0x37] sm:$0x1]
        %v958 = vld [vmem:[%s452 + $0x38] sm:$0x1]
        %v959 = vld [vmem:[%s452 + $0x39] sm:$0x1]
        %v960 = vld [vmem:[%s452 + $0x3a] sm:$0x1]
        %v961 = vld [vmem:[%s452 + $0x3b] sm:$0x1]
        %v962 = vld [vmem:[%s452 + $0x3c] sm:$0x1]
        %v963 = vld [vmem:[%s452 + $0x3d] sm:$0x1]
        %v964 = vld [vmem:[%s452 + $0x3e] sm:$0x1]
        %v965 = vld [vmem:[%s452 + $0x3f] sm:$0x1]
        %v1030 = vperm.slane %v902, 0
        %v1031 = vperm.slane %v903, 0
        %v1032 = vperm.slane %v904, 0
        %v1033 = vperm.slane %v905, 0
        %v1034 = vperm.slane %v906, 0
        %v1035 = vperm.slane %v907, 0
        %v1036 = vperm.slane %v908, 0
        %v1037 = vperm.slane %v909, 0
        %v1038 = vperm.slane %v910, 0
        %v1039 = vperm.slane %v911, 0
        %v1040 = vperm.slane %v912, 0
        %v1041 = vperm.slane %v913, 0
        %v1042 = vperm.slane %v914, 0
        %v1043 = vperm.slane %v915, 0
        %v1044 = vperm.slane %v916, 0
        %v1045 = vperm.slane %v917, 0
        %v1046 = vperm.slane %v918, 0
        %v1047 = vperm.slane %v919, 0
        %v1048 = vperm.slane %v920, 0
        %v1049 = vperm.slane %v921, 0
        %v1050 = vperm.slane %v922, 0
        %v1051 = vperm.slane %v923, 0
        %v1052 = vperm.slane %v924, 0
        %v1053 = vperm.slane %v925, 0
        %v1054 = vperm.slane %v926, 0
        %v1055 = vperm.slane %v927, 0
        %v1056 = vperm.slane %v928, 0
        %v1057 = vperm.slane %v929, 0
        %v1058 = vperm.slane %v930, 0
        %v1059 = vperm.slane %v931, 0
        %v1060 = vperm.slane %v932, 0
        %v1061 = vperm.slane %v933, 0
        %v1062 = vperm.slane %v934, 0
        %v1063 = vperm.slane %v935, 0
        %v1064 = vperm.slane %v936, 0
        %v1065 = vperm.slane %v937, 0
        %v1066 = vperm.slane %v938, 0
        %v1067 = vperm.slane %v939, 0
        %v1068 = vperm.slane %v940, 0
        %v1069 = vperm.slane %v941, 0
        %v1070 = vperm.slane %v942, 0
        %v1071 = vperm.slane %v943, 0
        %v1072 = vperm.slane %v944, 0
        %v1073 = vperm.slane %v945, 0
        %v1074 = vperm.slane %v946, 0
        %v1075 = vperm.slane %v947, 0
        %v1076 = vperm.slane %v948, 0
        %v1077 = vperm.slane %v949, 0
        %v1078 = vperm.slane %v950, 0
        %v1079 = vperm.slane %v951, 0
        %v1080 = vperm.slane %v952, 0
        %v1081 = vperm.slane %v953, 0
        %v1082 = vperm.slane %v954, 0
        %v1083 = vperm.slane %v955, 0
        %v1084 = vperm.slane %v956, 0
        %v1085 = vperm.slane %v957, 0
        %v1086 = vperm.slane %v958, 0
        %v1087 = vperm.slane %v959, 0
        %v1088 = vperm.slane %v960, 0
        %v1089 = vperm.slane %v961, 0
        %v1090 = vperm.slane %v962, 0
        %v1091 = vperm.slane %v963, 0
        %v1092 = vperm.slane %v964, 0
        %v1093 = vperm.slane %v965, 0
        %s1158 = scalar_lea.vmem %s449, 512 [#allocation3]
        %1159 = vst.msk [vmem:[%s1158] sm:$0xff] %vm837, %v1030
        %1160 = vst.msk [vmem:[%s1158 + $0x8] sm:$0xff] %vm837, %v1031
        %1161 = vst.msk [vmem:[%s1158 + $0x10] sm:$0xff] %vm837, %v1032
        %1162 = vst.msk [vmem:[%s1158 + $0x18] sm:$0xff] %vm837, %v1033
        %1163 = vst.msk [vmem:[%s1158 + $0x20] sm:$0xff] %vm837, %v1034
        %1164 = vst.msk [vmem:[%s1158 + $0x28] sm:$0xff] %vm837, %v1035
        %1165 = vst.msk [vmem:[%s1158 + $0x30] sm:$0xff] %vm837, %v1036
        %1166 = vst.msk [vmem:[%s1158 + $0x38] sm:$0xff] %vm837, %v1037
        %1167 = vst.msk [vmem:[%s1158 + $0x40] sm:$0xff] %vm837, %v1038
        %1168 = vst.msk [vmem:[%s1158 + $0x48] sm:$0xff] %vm837, %v1039
        %1169 = vst.msk [vmem:[%s1158 + $0x50] sm:$0xff] %vm837, %v1040
        %1170 = vst.msk [vmem:[%s1158 + $0x58] sm:$0xff] %vm837, %v1041
        %1171 = vst.msk [vmem:[%s1158 + $0x60] sm:$0xff] %vm837, %v1042
        %1172 = vst.msk [vmem:[%s1158 + $0x68] sm:$0xff] %vm837, %v1043
        %1173 = vst.msk [vmem:[%s1158 + $0x70] sm:$0xff] %vm837, %v1044
        %1174 = vst.msk [vmem:[%s1158 + $0x78] sm:$0xff] %vm837, %v1045
        %1175 = vst.msk [vmem:[%s1158 + $0x80] sm:$0xff] %vm837, %v1046
        %1176 = vst.msk [vmem:[%s1158 + $0x88] sm:$0xff] %vm837, %v1047
        %1177 = vst.msk [vmem:[%s1158 + $0x90] sm:$0xff] %vm837, %v1048
        %1178 = vst.msk [vmem:[%s1158 + $0x98] sm:$0xff] %vm837, %v1049
        %1179 = vst.msk [vmem:[%s1158 + $0xa0] sm:$0xff] %vm837, %v1050
        %1180 = vst.msk [vmem:[%s1158 + $0xa8] sm:$0xff] %vm837, %v1051
        %1181 = vst.msk [vmem:[%s1158 + $0xb0] sm:$0xff] %vm837, %v1052
        %1182 = vst.msk [vmem:[%s1158 + $0xb8] sm:$0xff] %vm837, %v1053
        %1183 = vst.msk [vmem:[%s1158 + $0xc0] sm:$0xff] %vm837, %v1054
        %1184 = vst.msk [vmem:[%s1158 + $0xc8] sm:$0xff] %vm837, %v1055
        %1185 = vst.msk [vmem:[%s1158 + $0xd0] sm:$0xff] %vm837, %v1056
        %1186 = vst.msk [vmem:[%s1158 + $0xd8] sm:$0xff] %vm837, %v1057
        %1187 = vst.msk [vmem:[%s1158 + $0xe0] sm:$0xff] %vm837, %v1058
        %1188 = vst.msk [vmem:[%s1158 + $0xe8] sm:$0xff] %vm837, %v1059
        %1189 = vst.msk [vmem:[%s1158 + $0xf0] sm:$0xff] %vm837, %v1060
        %1190 = vst.msk [vmem:[%s1158 + $0xf8] sm:$0xff] %vm837, %v1061
        %1191 = vst.msk [vmem:[%s1158 + $0x100] sm:$0xff] %vm837, %v1062
        %1192 = vst.msk [vmem:[%s1158 + $0x108] sm:$0xff] %vm837, %v1063
        %1193 = vst.msk [vmem:[%s1158 + $0x110] sm:$0xff] %vm837, %v1064
        %1194 = vst.msk [vmem:[%s1158 + $0x118] sm:$0xff] %vm837, %v1065
        %1195 = vst.msk [vmem:[%s1158 + $0x120] sm:$0xff] %vm837, %v1066
        %1196 = vst.msk [vmem:[%s1158 + $0x128] sm:$0xff] %vm837, %v1067
        %1197 = vst.msk [vmem:[%s1158 + $0x130] sm:$0xff] %vm837, %v1068
        %1198 = vst.msk [vmem:[%s1158 + $0x138] sm:$0xff] %vm837, %v1069
        %1199 = vst.msk [vmem:[%s1158 + $0x140] sm:$0xff] %vm837, %v1070
        %1200 = vst.msk [vmem:[%s1158 + $0x148] sm:$0xff] %vm837, %v1071
        %1201 = vst.msk [vmem:[%s1158 + $0x150] sm:$0xff] %vm837, %v1072
        %1202 = vst.msk [vmem:[%s1158 + $0x158] sm:$0xff] %vm837, %v1073
        %1203 = vst.msk [vmem:[%s1158 + $0x160] sm:$0xff] %vm837, %v1074
        %1204 = vst.msk [vmem:[%s1158 + $0x168] sm:$0xff] %vm837, %v1075
        %1205 = vst.msk [vmem:[%s1158 + $0x170] sm:$0xff] %vm837, %v1076
        %1206 = vst.msk [vmem:[%s1158 + $0x178] sm:$0xff] %vm837, %v1077
        %1207 = vst.msk [vmem:[%s1158 + $0x180] sm:$0xff] %vm837, %v1078
        %1208 = vst.msk [vmem:[%s1158 + $0x188] sm:$0xff] %vm837, %v1079
        %1209 = vst.msk [vmem:[%s1158 + $0x190] sm:$0xff] %vm837, %v1080
        %1210 = vst.msk [vmem:[%s1158 + $0x198] sm:$0xff] %vm837, %v1081
        %1211 = vst.msk [vmem:[%s1158 + $0x1a0] sm:$0xff] %vm837, %v1082
        %1212 = vst.msk [vmem:[%s1158 + $0x1a8] sm:$0xff] %vm837, %v1083
        %1213 = vst.msk [vmem:[%s1158 + $0x1b0] sm:$0xff] %vm837, %v1084
        %1214 = vst.msk [vmem:[%s1158 + $0x1b8] sm:$0xff] %vm837, %v1085
        %1215 = vst.msk [vmem:[%s1158 + $0x1c0] sm:$0xff] %vm837, %v1086
        %1216 = vst.msk [vmem:[%s1158 + $0x1c8] sm:$0xff] %vm837, %v1087
        %1217 = vst.msk [vmem:[%s1158 + $0x1d0] sm:$0xff] %vm837, %v1088
        %1218 = vst.msk [vmem:[%s1158 + $0x1d8] sm:$0xff] %vm837, %v1089
        %1219 = vst.msk [vmem:[%s1158 + $0x1e0] sm:$0xff] %vm837, %v1090
        %1220 = vst.msk [vmem:[%s1158 + $0x1e8] sm:$0xff] %vm837, %v1091
        %1221 = vst.msk [vmem:[%s1158 + $0x1f0] sm:$0xff] %vm837, %v1092
        %1222 = vst.msk [vmem:[%s1158 + $0x1f8] sm:$0xff] %vm837, %v1093
        %s1223 = sand.u32 %s87, 1
        %s1224 = sand.u32 %s87, 1
        %s1225 = smul.addr %s1224, 1024
        %s1226 = scalar_lea.vmem [#allocation3], %s1225
        // Predicated region
        $region67: #{tpu_custom_call.1} parent=61 // pred_check
          %p1227 = pneg %p97
        $region68: #{tpu_custom_call.1} parent=61 // pred_check_branch
          %1229 = sbr.rel (%p1227) target = $region70
        $region69: #{tpu_custom_call.1} parent=61 // pred_region
          %s1230 = sadd.s32 %s18, %s17
          %s1231 = smul.addr %s1230, 8
          %s1232 = scalar_lea.vmem %s2, %s1231
          // Predicated region
          $region71: #{tpu_custom_call.1} parent=69 // pred_check
            _
          $region72: #{tpu_custom_call.1} parent=69 // pred_check_branch
            %1234 = sbr.rel (0) target = $region74
          $region73: #{tpu_custom_call.1} parent=69 // pred_region
            // Predicated region
            $region75: #{tpu_custom_call.1} parent=73 // pred_check
              _
            $region76: #{tpu_custom_call.1} parent=73 // pred_check_branch
              %1236 = sbr.rel (0) target = $region78
            $region77: #{tpu_custom_call.1} parent=73 // pred_region
              // Predicated region
              $region90: #{tpu_custom_call.1} parent=77 // pred_check
                _
              $region91: #{tpu_custom_call.1} parent=77 // pred_check_branch
                %1506 = sbr.rel (0) target = $region93
              $region92: #{tpu_custom_call.1} parent=77 // pred_region
                loop: start=0, step=1, limit=1
                $region94: #{tpu_custom_call.1} parent=92 // loop_pre_header
                  _
                $region95: #{tpu_custom_call.1} parent=92 // loop_header
                  %s1508 = sphi 0, %s1512
                  %p1509 = scmp.ge.s32.totalorder %s1508, 1
                  %s1513 = sphi %s1226, %s1226
                  %s1514 = sphi %s1232, %s1232
                $region96: #{tpu_custom_call.1} parent=92 // loop_header_branch
                  %1511 = sbr.rel (%p1509) target = $region100
                $region97: #{tpu_custom_call.1} parent=92 // loop_body
                  %v1515 = vld [vmem:[%s1513] sm:$0xff]
                  %1516 = vst [vmem:[%s1514] sm:$0xff] %v1515
                  %v1517 = vld [vmem:[%s1513 + $0x8] sm:$0xff]
                  %1518 = vst [vmem:[%s1514 + $0x10] sm:$0xff] %v1517
                  %v1519 = vld [vmem:[%s1513 + $0x10] sm:$0xff]
                  %1520 = vst [vmem:[%s1514 + $0x20] sm:$0xff] %v1519
                  %v1521 = vld [vmem:[%s1513 + $0x18] sm:$0xff]
                  %1522 = vst [vmem:[%s1514 + $0x30] sm:$0xff] %v1521
                  %v1523 = vld [vmem:[%s1513 + $0x20] sm:$0xff]
                  %1524 = vst [vmem:[%s1514 + $0x40] sm:$0xff] %v1523
                  %v1525 = vld [vmem:[%s1513 + $0x28] sm:$0xff]
                  %1526 = vst [vmem:[%s1514 + $0x50] sm:$0xff] %v1525
                  %v1527 = vld [vmem:[%s1513 + $0x30] sm:$0xff]
                  %1528 = vst [vmem:[%s1514 + $0x60] sm:$0xff] %v1527
                  %v1529 = vld [vmem:[%s1513 + $0x38] sm:$0xff]
                  %1530 = vst [vmem:[%s1514 + $0x70] sm:$0xff] %v1529
                  %v1531 = vld [vmem:[%s1513 + $0x40] sm:$0xff]
                  %1532 = vst [vmem:[%s1514 + $0x80] sm:$0xff] %v1531
                  %v1533 = vld [vmem:[%s1513 + $0x48] sm:$0xff]
                  %1534 = vst [vmem:[%s1514 + $0x90] sm:$0xff] %v1533
                  %v1535 = vld [vmem:[%s1513 + $0x50] sm:$0xff]
                  %1536 = vst [vmem:[%s1514 + $0xa0] sm:$0xff] %v1535
                  %v1537 = vld [vmem:[%s1513 + $0x58] sm:$0xff]
                  %1538 = vst [vmem:[%s1514 + $0xb0] sm:$0xff] %v1537
                  %v1539 = vld [vmem:[%s1513 + $0x60] sm:$0xff]
                  %1540 = vst [vmem:[%s1514 + $0xc0] sm:$0xff] %v1539
                  %v1541 = vld [vmem:[%s1513 + $0x68] sm:$0xff]
                  %1542 = vst [vmem:[%s1514 + $0xd0] sm:$0xff] %v1541
                  %v1543 = vld [vmem:[%s1513 + $0x70] sm:$0xff]
                  %1544 = vst [vmem:[%s1514 + $0xe0] sm:$0xff] %v1543
                  %v1545 = vld [vmem:[%s1513 + $0x78] sm:$0xff]
                  %1546 = vst [vmem:[%s1514 + $0xf0] sm:$0xff] %v1545
                  %v1547 = vld [vmem:[%s1513 + $0x80] sm:$0xff]
                  %1548 = vst [vmem:[%s1514 + $0x100] sm:$0xff] %v1547
                  %v1549 = vld [vmem:[%s1513 + $0x88] sm:$0xff]
                  %1550 = vst [vmem:[%s1514 + $0x110] sm:$0xff] %v1549
                  %v1551 = vld [vmem:[%s1513 + $0x90] sm:$0xff]
                  %1552 = vst [vmem:[%s1514 + $0x120] sm:$0xff] %v1551
                  %v1553 = vld [vmem:[%s1513 + $0x98] sm:$0xff]
                  %1554 = vst [vmem:[%s1514 + $0x130] sm:$0xff] %v1553
                  %v1555 = vld [vmem:[%s1513 + $0xa0] sm:$0xff]
                  %1556 = vst [vmem:[%s1514 + $0x140] sm:$0xff] %v1555
                  %v1557 = vld [vmem:[%s1513 + $0xa8] sm:$0xff]
                  %1558 = vst [vmem:[%s1514 + $0x150] sm:$0xff] %v1557
                  %v1559 = vld [vmem:[%s1513 + $0xb0] sm:$0xff]
                  %1560 = vst [vmem:[%s1514 + $0x160] sm:$0xff] %v1559
                  %v1561 = vld [vmem:[%s1513 + $0xb8] sm:$0xff]
                  %1562 = vst [vmem:[%s1514 + $0x170] sm:$0xff] %v1561
                  %v1563 = vld [vmem:[%s1513 + $0xc0] sm:$0xff]
                  %1564 = vst [vmem:[%s1514 + $0x180] sm:$0xff] %v1563
                  %v1565 = vld [vmem:[%s1513 + $0xc8] sm:$0xff]
                  %1566 = vst [vmem:[%s1514 + $0x190] sm:$0xff] %v1565
                  %v1567 = vld [vmem:[%s1513 + $0xd0] sm:$0xff]
                  %1568 = vst [vmem:[%s1514 + $0x1a0] sm:$0xff] %v1567
                  %v1569 = vld [vmem:[%s1513 + $0xd8] sm:$0xff]
                  %1570 = vst [vmem:[%s1514 + $0x1b0] sm:$0xff] %v1569
                  %v1571 = vld [vmem:[%s1513 + $0xe0] sm:$0xff]
                  %1572 = vst [vmem:[%s1514 + $0x1c0] sm:$0xff] %v1571
                  %v1573 = vld [vmem:[%s1513 + $0xe8] sm:$0xff]
                  %1574 = vst [vmem:[%s1514 + $0x1d0] sm:$0xff] %v1573
                  %v1575 = vld [vmem:[%s1513 + $0xf0] sm:$0xff]
                  %1576 = vst [vmem:[%s1514 + $0x1e0] sm:$0xff] %v1575
                  %v1577 = vld [vmem:[%s1513 + $0xf8] sm:$0xff]
                  %1578 = vst [vmem:[%s1514 + $0x1f0] sm:$0xff] %v1577
                  %v1579 = vld [vmem:[%s1513 + $0x100] sm:$0xff]
                  %1580 = vst [vmem:[%s1514 + $0x200] sm:$0xff] %v1579
                  %v1581 = vld [vmem:[%s1513 + $0x108] sm:$0xff]
                  %1582 = vst [vmem:[%s1514 + $0x210] sm:$0xff] %v1581
                  %v1583 = vld [vmem:[%s1513 + $0x110] sm:$0xff]
                  %1584 = vst [vmem:[%s1514 + $0x220] sm:$0xff] %v1583
                  %v1585 = vld [vmem:[%s1513 + $0x118] sm:$0xff]
                  %1586 = vst [vmem:[%s1514 + $0x230] sm:$0xff] %v1585
                  %v1587 = vld [vmem:[%s1513 + $0x120] sm:$0xff]
                  %1588 = vst [vmem:[%s1514 + $0x240] sm:$0xff] %v1587
                  %v1589 = vld [vmem:[%s1513 + $0x128] sm:$0xff]
                  %1590 = vst [vmem:[%s1514 + $0x250] sm:$0xff] %v1589
                  %v1591 = vld [vmem:[%s1513 + $0x130] sm:$0xff]
                  %1592 = vst [vmem:[%s1514 + $0x260] sm:$0xff] %v1591
                  %v1593 = vld [vmem:[%s1513 + $0x138] sm:$0xff]
                  %1594 = vst [vmem:[%s1514 + $0x270] sm:$0xff] %v1593
                  %v1595 = vld [vmem:[%s1513 + $0x140] sm:$0xff]
                  %1596 = vst [vmem:[%s1514 + $0x280] sm:$0xff] %v1595
                  %v1597 = vld [vmem:[%s1513 + $0x148] sm:$0xff]
                  %1598 = vst [vmem:[%s1514 + $0x290] sm:$0xff] %v1597
                  %v1599 = vld [vmem:[%s1513 + $0x150] sm:$0xff]
                  %1600 = vst [vmem:[%s1514 + $0x2a0] sm:$0xff] %v1599
                  %v1601 = vld [vmem:[%s1513 + $0x158] sm:$0xff]
                  %1602 = vst [vmem:[%s1514 + $0x2b0] sm:$0xff] %v1601
                  %v1603 = vld [vmem:[%s1513 + $0x160] sm:$0xff]
                  %1604 = vst [vmem:[%s1514 + $0x2c0] sm:$0xff] %v1603
                  %v1605 = vld [vmem:[%s1513 + $0x168] sm:$0xff]
                  %1606 = vst [vmem:[%s1514 + $0x2d0] sm:$0xff] %v1605
                  %v1607 = vld [vmem:[%s1513 + $0x170] sm:$0xff]
                  %1608 = vst [vmem:[%s1514 + $0x2e0] sm:$0xff] %v1607
                  %v1609 = vld [vmem:[%s1513 + $0x178] sm:$0xff]
                  %1610 = vst [vmem:[%s1514 + $0x2f0] sm:$0xff] %v1609
                  %v1611 = vld [vmem:[%s1513 + $0x180] sm:$0xff]
                  %1612 = vst [vmem:[%s1514 + $0x300] sm:$0xff] %v1611
                  %v1613 = vld [vmem:[%s1513 + $0x188] sm:$0xff]
                  %1614 = vst [vmem:[%s1514 + $0x310] sm:$0xff] %v1613
                  %v1615 = vld [vmem:[%s1513 + $0x190] sm:$0xff]
                  %1616 = vst [vmem:[%s1514 + $0x320] sm:$0xff] %v1615
                  %v1617 = vld [vmem:[%s1513 + $0x198] sm:$0xff]
                  %1618 = vst [vmem:[%s1514 + $0x330] sm:$0xff] %v1617
                  %v1619 = vld [vmem:[%s1513 + $0x1a0] sm:$0xff]
                  %1620 = vst [vmem:[%s1514 + $0x340] sm:$0xff] %v1619
                  %v1621 = vld [vmem:[%s1513 + $0x1a8] sm:$0xff]
                  %1622 = vst [vmem:[%s1514 + $0x350] sm:$0xff] %v1621
                  %v1623 = vld [vmem:[%s1513 + $0x1b0] sm:$0xff]
                  %1624 = vst [vmem:[%s1514 + $0x360] sm:$0xff] %v1623
                  %v1625 = vld [vmem:[%s1513 + $0x1b8] sm:$0xff]
                  %1626 = vst [vmem:[%s1514 + $0x370] sm:$0xff] %v1625
                  %v1627 = vld [vmem:[%s1513 + $0x1c0] sm:$0xff]
                  %1628 = vst [vmem:[%s1514 + $0x380] sm:$0xff] %v1627
                  %v1629 = vld [vmem:[%s1513 + $0x1c8] sm:$0xff]
                  %1630 = vst [vmem:[%s1514 + $0x390] sm:$0xff] %v1629
                  %v1631 = vld [vmem:[%s1513 + $0x1d0] sm:$0xff]
                  %1632 = vst [vmem:[%s1514 + $0x3a0] sm:$0xff] %v1631
                  %v1633 = vld [vmem:[%s1513 + $0x1d8] sm:$0xff]
                  %1634 = vst [vmem:[%s1514 + $0x3b0] sm:$0xff] %v1633
                  %v1635 = vld [vmem:[%s1513 + $0x1e0] sm:$0xff]
                  %1636 = vst [vmem:[%s1514 + $0x3c0] sm:$0xff] %v1635
                  %v1637 = vld [vmem:[%s1513 + $0x1e8] sm:$0xff]
                  %1638 = vst [vmem:[%s1514 + $0x3d0] sm:$0xff] %v1637
                  %v1639 = vld [vmem:[%s1513 + $0x1f0] sm:$0xff]
                  %1640 = vst [vmem:[%s1514 + $0x3e0] sm:$0xff] %v1639
                  %v1641 = vld [vmem:[%s1513 + $0x1f8] sm:$0xff]
                  %1642 = vst [vmem:[%s1514 + $0x3f0] sm:$0xff] %v1641
                  %v1643 = vld [vmem:[%s1513 + $0x200] sm:$0xff]
                  %1644 = vst [vmem:[%s1514 + $0x400] sm:$0xff] %v1643
                  %v1645 = vld [vmem:[%s1513 + $0x208] sm:$0xff]
                  %1646 = vst [vmem:[%s1514 + $0x410] sm:$0xff] %v1645
                  %v1647 = vld [vmem:[%s1513 + $0x210] sm:$0xff]
                  %1648 = vst [vmem:[%s1514 + $0x420] sm:$0xff] %v1647
                  %v1649 = vld [vmem:[%s1513 + $0x218] sm:$0xff]
                  %1650 = vst [vmem:[%s1514 + $0x430] sm:$0xff] %v1649
                  %v1651 = vld [vmem:[%s1513 + $0x220] sm:$0xff]
                  %1652 = vst [vmem:[%s1514 + $0x440] sm:$0xff] %v1651
                  %v1653 = vld [vmem:[%s1513 + $0x228] sm:$0xff]
                  %1654 = vst [vmem:[%s1514 + $0x450] sm:$0xff] %v1653
                  %v1655 = vld [vmem:[%s1513 + $0x230] sm:$0xff]
                  %1656 = vst [vmem:[%s1514 + $0x460] sm:$0xff] %v1655
                  %v1657 = vld [vmem:[%s1513 + $0x238] sm:$0xff]
                  %1658 = vst [vmem:[%s1514 + $0x470] sm:$0xff] %v1657
                  %v1659 = vld [vmem:[%s1513 + $0x240] sm:$0xff]
                  %1660 = vst [vmem:[%s1514 + $0x480] sm:$0xff] %v1659
                  %v1661 = vld [vmem:[%s1513 + $0x248] sm:$0xff]
                  %1662 = vst [vmem:[%s1514 + $0x490] sm:$0xff] %v1661
                  %v1663 = vld [vmem:[%s1513 + $0x250] sm:$0xff]
                  %1664 = vst [vmem:[%s1514 + $0x4a0] sm:$0xff] %v1663
                  %v1665 = vld [vmem:[%s1513 + $0x258] sm:$0xff]
                  %1666 = vst [vmem:[%s1514 + $0x4b0] sm:$0xff] %v1665
                  %v1667 = vld [vmem:[%s1513 + $0x260] sm:$0xff]
                  %1668 = vst [vmem:[%s1514 + $0x4c0] sm:$0xff] %v1667
                  %v1669 = vld [vmem:[%s1513 + $0x268] sm:$0xff]
                  %1670 = vst [vmem:[%s1514 + $0x4d0] sm:$0xff] %v1669
                  %v1671 = vld [vmem:[%s1513 + $0x270] sm:$0xff]
                  %1672 = vst [vmem:[%s1514 + $0x4e0] sm:$0xff] %v1671
                  %v1673 = vld [vmem:[%s1513 + $0x278] sm:$0xff]
                  %1674 = vst [vmem:[%s1514 + $0x4f0] sm:$0xff] %v1673
                  %v1675 = vld [vmem:[%s1513 + $0x280] sm:$0xff]
                  %1676 = vst [vmem:[%s1514 + $0x500] sm:$0xff] %v1675
                  %v1677 = vld [vmem:[%s1513 + $0x288] sm:$0xff]
                  %1678 = vst [vmem:[%s1514 + $0x510] sm:$0xff] %v1677
                  %v1679 = vld [vmem:[%s1513 + $0x290] sm:$0xff]
                  %1680 = vst [vmem:[%s1514 + $0x520] sm:$0xff] %v1679
                  %v1681 = vld [vmem:[%s1513 + $0x298] sm:$0xff]
                  %1682 = vst [vmem:[%s1514 + $0x530] sm:$0xff] %v1681
                  %v1683 = vld [vmem:[%s1513 + $0x2a0] sm:$0xff]
                  %1684 = vst [vmem:[%s1514 + $0x540] sm:$0xff] %v1683
                  %v1685 = vld [vmem:[%s1513 + $0x2a8] sm:$0xff]
                  %1686 = vst [vmem:[%s1514 + $0x550] sm:$0xff] %v1685
                  %v1687 = vld [vmem:[%s1513 + $0x2b0] sm:$0xff]
                  %1688 = vst [vmem:[%s1514 + $0x560] sm:$0xff] %v1687
                  %v1689 = vld [vmem:[%s1513 + $0x2b8] sm:$0xff]
                  %1690 = vst [vmem:[%s1514 + $0x570] sm:$0xff] %v1689
                  %v1691 = vld [vmem:[%s1513 + $0x2c0] sm:$0xff]
                  %1692 = vst [vmem:[%s1514 + $0x580] sm:$0xff] %v1691
                  %v1693 = vld [vmem:[%s1513 + $0x2c8] sm:$0xff]
                  %1694 = vst [vmem:[%s1514 + $0x590] sm:$0xff] %v1693
                  %v1695 = vld [vmem:[%s1513 + $0x2d0] sm:$0xff]
                  %1696 = vst [vmem:[%s1514 + $0x5a0] sm:$0xff] %v1695
                  %v1697 = vld [vmem:[%s1513 + $0x2d8] sm:$0xff]
                  %1698 = vst [vmem:[%s1514 + $0x5b0] sm:$0xff] %v1697
                  %v1699 = vld [vmem:[%s1513 + $0x2e0] sm:$0xff]
                  %1700 = vst [vmem:[%s1514 + $0x5c0] sm:$0xff] %v1699
                  %v1701 = vld [vmem:[%s1513 + $0x2e8] sm:$0xff]
                  %1702 = vst [vmem:[%s1514 + $0x5d0] sm:$0xff] %v1701
                  %v1703 = vld [vmem:[%s1513 + $0x2f0] sm:$0xff]
                  %1704 = vst [vmem:[%s1514 + $0x5e0] sm:$0xff] %v1703
                  %v1705 = vld [vmem:[%s1513 + $0x2f8] sm:$0xff]
                  %1706 = vst [vmem:[%s1514 + $0x5f0] sm:$0xff] %v1705
                  %v1707 = vld [vmem:[%s1513 + $0x300] sm:$0xff]
                  %1708 = vst [vmem:[%s1514 + $0x600] sm:$0xff] %v1707
                  %v1709 = vld [vmem:[%s1513 + $0x308] sm:$0xff]
                  %1710 = vst [vmem:[%s1514 + $0x610] sm:$0xff] %v1709
                  %v1711 = vld [vmem:[%s1513 + $0x310] sm:$0xff]
                  %1712 = vst [vmem:[%s1514 + $0x620] sm:$0xff] %v1711
                  %v1713 = vld [vmem:[%s1513 + $0x318] sm:$0xff]
                  %1714 = vst [vmem:[%s1514 + $0x630] sm:$0xff] %v1713
                  %v1715 = vld [vmem:[%s1513 + $0x320] sm:$0xff]
                  %1716 = vst [vmem:[%s1514 + $0x640] sm:$0xff] %v1715
                  %v1717 = vld [vmem:[%s1513 + $0x328] sm:$0xff]
                  %1718 = vst [vmem:[%s1514 + $0x650] sm:$0xff] %v1717
                  %v1719 = vld [vmem:[%s1513 + $0x330] sm:$0xff]
                  %1720 = vst [vmem:[%s1514 + $0x660] sm:$0xff] %v1719
                  %v1721 = vld [vmem:[%s1513 + $0x338] sm:$0xff]
                  %1722 = vst [vmem:[%s1514 + $0x670] sm:$0xff] %v1721
                  %v1723 = vld [vmem:[%s1513 + $0x340] sm:$0xff]
                  %1724 = vst [vmem:[%s1514 + $0x680] sm:$0xff] %v1723
                  %v1725 = vld [vmem:[%s1513 + $0x348] sm:$0xff]
                  %1726 = vst [vmem:[%s1514 + $0x690] sm:$0xff] %v1725
                  %v1727 = vld [vmem:[%s1513 + $0x350] sm:$0xff]
                  %1728 = vst [vmem:[%s1514 + $0x6a0] sm:$0xff] %v1727
                  %v1729 = vld [vmem:[%s1513 + $0x358] sm:$0xff]
                  %1730 = vst [vmem:[%s1514 + $0x6b0] sm:$0xff] %v1729
                  %v1731 = vld [vmem:[%s1513 + $0x360] sm:$0xff]
                  %1732 = vst [vmem:[%s1514 + $0x6c0] sm:$0xff] %v1731
                  %v1733 = vld [vmem:[%s1513 + $0x368] sm:$0xff]
                  %1734 = vst [vmem:[%s1514 + $0x6d0] sm:$0xff] %v1733
                  %v1735 = vld [vmem:[%s1513 + $0x370] sm:$0xff]
                  %1736 = vst [vmem:[%s1514 + $0x6e0] sm:$0xff] %v1735
                  %v1737 = vld [vmem:[%s1513 + $0x378] sm:$0xff]
                  %1738 = vst [vmem:[%s1514 + $0x6f0] sm:$0xff] %v1737
                  %v1739 = vld [vmem:[%s1513 + $0x380] sm:$0xff]
                  %1740 = vst [vmem:[%s1514 + $0x700] sm:$0xff] %v1739
                  %v1741 = vld [vmem:[%s1513 + $0x388] sm:$0xff]
                  %1742 = vst [vmem:[%s1514 + $0x710] sm:$0xff] %v1741
                  %v1743 = vld [vmem:[%s1513 + $0x390] sm:$0xff]
                  %1744 = vst [vmem:[%s1514 + $0x720] sm:$0xff] %v1743
                  %v1745 = vld [vmem:[%s1513 + $0x398] sm:$0xff]
                  %1746 = vst [vmem:[%s1514 + $0x730] sm:$0xff] %v1745
                  %v1747 = vld [vmem:[%s1513 + $0x3a0] sm:$0xff]
                  %1748 = vst [vmem:[%s1514 + $0x740] sm:$0xff] %v1747
                  %v1749 = vld [vmem:[%s1513 + $0x3a8] sm:$0xff]
                  %1750 = vst [vmem:[%s1514 + $0x750] sm:$0xff] %v1749
                  %v1751 = vld [vmem:[%s1513 + $0x3b0] sm:$0xff]
                  %1752 = vst [vmem:[%s1514 + $0x760] sm:$0xff] %v1751
                  %v1753 = vld [vmem:[%s1513 + $0x3b8] sm:$0xff]
                  %1754 = vst [vmem:[%s1514 + $0x770] sm:$0xff] %v1753
                  %v1755 = vld [vmem:[%s1513 + $0x3c0] sm:$0xff]
                  %1756 = vst [vmem:[%s1514 + $0x780] sm:$0xff] %v1755
                  %v1757 = vld [vmem:[%s1513 + $0x3c8] sm:$0xff]
                  %1758 = vst [vmem:[%s1514 + $0x790] sm:$0xff] %v1757
                  %v1759 = vld [vmem:[%s1513 + $0x3d0] sm:$0xff]
                  %1760 = vst [vmem:[%s1514 + $0x7a0] sm:$0xff] %v1759
                  %v1761 = vld [vmem:[%s1513 + $0x3d8] sm:$0xff]
                  %1762 = vst [vmem:[%s1514 + $0x7b0] sm:$0xff] %v1761
                  %v1763 = vld [vmem:[%s1513 + $0x3e0] sm:$0xff]
                  %1764 = vst [vmem:[%s1514 + $0x7c0] sm:$0xff] %v1763
                  %v1765 = vld [vmem:[%s1513 + $0x3e8] sm:$0xff]
                  %1766 = vst [vmem:[%s1514 + $0x7d0] sm:$0xff] %v1765
                  %v1767 = vld [vmem:[%s1513 + $0x3f0] sm:$0xff]
                  %1768 = vst [vmem:[%s1514 + $0x7e0] sm:$0xff] %v1767
                  %v1769 = vld [vmem:[%s1513 + $0x3f8] sm:$0xff]
                  %1770 = vst [vmem:[%s1514 + $0x7f0] sm:$0xff] %v1769
                $region98: #{tpu_custom_call.1} parent=92 // loop_footer
                  %s1512 = sadd.s32 1, %s1508
                $region99: #{tpu_custom_call.1} parent=92 // loop_footer_branch
                  %1507 = sbr.rel target = $region95
                $region100: #{tpu_custom_call.1} parent=92 // loop_exit
                  _
              $region93: #{tpu_custom_call.1} parent=77 // pred_fallthru
                _
              // Predicated region
              $region101: #{tpu_custom_call.1} parent=77 // pred_check
                _
              $region102: #{tpu_custom_call.1} parent=77 // pred_check_branch
                %1772 = sbr.rel target = $region104
              $region103: #{tpu_custom_call.1} parent=77 // pred_region
                _
              $region104: #{tpu_custom_call.1} parent=77 // pred_fallthru
                _
            $region78: #{tpu_custom_call.1} parent=73 // pred_fallthru
              _
            // Predicated region
            $region79: #{tpu_custom_call.1} parent=73 // pred_check
              _
            $region80: #{tpu_custom_call.1} parent=73 // pred_check_branch
              %1238 = sbr.rel target = $region82
            $region81: #{tpu_custom_call.1} parent=73 // pred_region
              %s1240 = ssub.s32 256, 1
              loop: start=0, step=1, limit=1
              $region83: #{tpu_custom_call.1} parent=81 // loop_pre_header
                _
              $region84: #{tpu_custom_call.1} parent=81 // loop_header
                %s1242 = sphi 0, %s1246
                %p1243 = scmp.ge.s32.totalorder %s1242, 1
                %s1247 = sphi %s1226, %s1226
                %s1248 = sphi %s1232, %s1232
              $region85: #{tpu_custom_call.1} parent=81 // loop_header_branch
                %1245 = sbr.rel (%p1243) target = $region89
              $region86: #{tpu_custom_call.1} parent=81 // loop_body
                %v1249 = vld [vmem:[%s1247] sm:%s1240]
                %1250 = vst [vmem:[%s1248] sm:%s1240] %v1249
                %v1251 = vld [vmem:[%s1247 + $0x8] sm:%s1240]
                %1252 = vst [vmem:[%s1248 + $0x10] sm:%s1240] %v1251
                %v1253 = vld [vmem:[%s1247 + $0x10] sm:%s1240]
                %1254 = vst [vmem:[%s1248 + $0x20] sm:%s1240] %v1253
                %v1255 = vld [vmem:[%s1247 + $0x18] sm:%s1240]
                %1256 = vst [vmem:[%s1248 + $0x30] sm:%s1240] %v1255
                %v1257 = vld [vmem:[%s1247 + $0x20] sm:%s1240]
                %1258 = vst [vmem:[%s1248 + $0x40] sm:%s1240] %v1257
                %v1259 = vld [vmem:[%s1247 + $0x28] sm:%s1240]
                %1260 = vst [vmem:[%s1248 + $0x50] sm:%s1240] %v1259
                %v1261 = vld [vmem:[%s1247 + $0x30] sm:%s1240]
                %1262 = vst [vmem:[%s1248 + $0x60] sm:%s1240] %v1261
                %v1263 = vld [vmem:[%s1247 + $0x38] sm:%s1240]
                %1264 = vst [vmem:[%s1248 + $0x70] sm:%s1240] %v1263
                %v1265 = vld [vmem:[%s1247 + $0x40] sm:%s1240]
                %1266 = vst [vmem:[%s1248 + $0x80] sm:%s1240] %v1265
                %v1267 = vld [vmem:[%s1247 + $0x48] sm:%s1240]
                %1268 = vst [vmem:[%s1248 + $0x90] sm:%s1240] %v1267
                %v1269 = vld [vmem:[%s1247 + $0x50] sm:%s1240]
                %1270 = vst [vmem:[%s1248 + $0xa0] sm:%s1240] %v1269
                %v1271 = vld [vmem:[%s1247 + $0x58] sm:%s1240]
                %1272 = vst [vmem:[%s1248 + $0xb0] sm:%s1240] %v1271
                %v1273 = vld [vmem:[%s1247 + $0x60] sm:%s1240]
                %1274 = vst [vmem:[%s1248 + $0xc0] sm:%s1240] %v1273
                %v1275 = vld [vmem:[%s1247 + $0x68] sm:%s1240]
                %1276 = vst [vmem:[%s1248 + $0xd0] sm:%s1240] %v1275
                %v1277 = vld [vmem:[%s1247 + $0x70] sm:%s1240]
                %1278 = vst [vmem:[%s1248 + $0xe0] sm:%s1240] %v1277
                %v1279 = vld [vmem:[%s1247 + $0x78] sm:%s1240]
                %1280 = vst [vmem:[%s1248 + $0xf0] sm:%s1240] %v1279
                %v1281 = vld [vmem:[%s1247 + $0x80] sm:%s1240]
                %1282 = vst [vmem:[%s1248 + $0x100] sm:%s1240] %v1281
                %v1283 = vld [vmem:[%s1247 + $0x88] sm:%s1240]
                %1284 = vst [vmem:[%s1248 + $0x110] sm:%s1240] %v1283
                %v1285 = vld [vmem:[%s1247 + $0x90] sm:%s1240]
                %1286 = vst [vmem:[%s1248 + $0x120] sm:%s1240] %v1285
                %v1287 = vld [vmem:[%s1247 + $0x98] sm:%s1240]
                %1288 = vst [vmem:[%s1248 + $0x130] sm:%s1240] %v1287
                %v1289 = vld [vmem:[%s1247 + $0xa0] sm:%s1240]
                %1290 = vst [vmem:[%s1248 + $0x140] sm:%s1240] %v1289
                %v1291 = vld [vmem:[%s1247 + $0xa8] sm:%s1240]
                %1292 = vst [vmem:[%s1248 + $0x150] sm:%s1240] %v1291
                %v1293 = vld [vmem:[%s1247 + $0xb0] sm:%s1240]
                %1294 = vst [vmem:[%s1248 + $0x160] sm:%s1240] %v1293
                %v1295 = vld [vmem:[%s1247 + $0xb8] sm:%s1240]
                %1296 = vst [vmem:[%s1248 + $0x170] sm:%s1240] %v1295
                %v1297 = vld [vmem:[%s1247 + $0xc0] sm:%s1240]
                %1298 = vst [vmem:[%s1248 + $0x180] sm:%s1240] %v1297
                %v1299 = vld [vmem:[%s1247 + $0xc8] sm:%s1240]
                %1300 = vst [vmem:[%s1248 + $0x190] sm:%s1240] %v1299
                %v1301 = vld [vmem:[%s1247 + $0xd0] sm:%s1240]
                %1302 = vst [vmem:[%s1248 + $0x1a0] sm:%s1240] %v1301
                %v1303 = vld [vmem:[%s1247 + $0xd8] sm:%s1240]
                %1304 = vst [vmem:[%s1248 + $0x1b0] sm:%s1240] %v1303
                %v1305 = vld [vmem:[%s1247 + $0xe0] sm:%s1240]
                %1306 = vst [vmem:[%s1248 + $0x1c0] sm:%s1240] %v1305
                %v1307 = vld [vmem:[%s1247 + $0xe8] sm:%s1240]
                %1308 = vst [vmem:[%s1248 + $0x1d0] sm:%s1240] %v1307
                %v1309 = vld [vmem:[%s1247 + $0xf0] sm:%s1240]
                %1310 = vst [vmem:[%s1248 + $0x1e0] sm:%s1240] %v1309
                %v1311 = vld [vmem:[%s1247 + $0xf8] sm:%s1240]
                %1312 = vst [vmem:[%s1248 + $0x1f0] sm:%s1240] %v1311
                %v1313 = vld [vmem:[%s1247 + $0x100] sm:%s1240]
                %1314 = vst [vmem:[%s1248 + $0x200] sm:%s1240] %v1313
                %v1315 = vld [vmem:[%s1247 + $0x108] sm:%s1240]
                %1316 = vst [vmem:[%s1248 + $0x210] sm:%s1240] %v1315
                %v1317 = vld [vmem:[%s1247 + $0x110] sm:%s1240]
                %1318 = vst [vmem:[%s1248 + $0x220] sm:%s1240] %v1317
                %v1319 = vld [vmem:[%s1247 + $0x118] sm:%s1240]
                %1320 = vst [vmem:[%s1248 + $0x230] sm:%s1240] %v1319
                %v1321 = vld [vmem:[%s1247 + $0x120] sm:%s1240]
                %1322 = vst [vmem:[%s1248 + $0x240] sm:%s1240] %v1321
                %v1323 = vld [vmem:[%s1247 + $0x128] sm:%s1240]
                %1324 = vst [vmem:[%s1248 + $0x250] sm:%s1240] %v1323
                %v1325 = vld [vmem:[%s1247 + $0x130] sm:%s1240]
                %1326 = vst [vmem:[%s1248 + $0x260] sm:%s1240] %v1325
                %v1327 = vld [vmem:[%s1247 + $0x138] sm:%s1240]
                %1328 = vst [vmem:[%s1248 + $0x270] sm:%s1240] %v1327
                %v1329 = vld [vmem:[%s1247 + $0x140] sm:%s1240]
                %1330 = vst [vmem:[%s1248 + $0x280] sm:%s1240] %v1329
                %v1331 = vld [vmem:[%s1247 + $0x148] sm:%s1240]
                %1332 = vst [vmem:[%s1248 + $0x290] sm:%s1240] %v1331
                %v1333 = vld [vmem:[%s1247 + $0x150] sm:%s1240]
                %1334 = vst [vmem:[%s1248 + $0x2a0] sm:%s1240] %v1333
                %v1335 = vld [vmem:[%s1247 + $0x158] sm:%s1240]
                %1336 = vst [vmem:[%s1248 + $0x2b0] sm:%s1240] %v1335
                %v1337 = vld [vmem:[%s1247 + $0x160] sm:%s1240]
                %1338 = vst [vmem:[%s1248 + $0x2c0] sm:%s1240] %v1337
                %v1339 = vld [vmem:[%s1247 + $0x168] sm:%s1240]
                %1340 = vst [vmem:[%s1248 + $0x2d0] sm:%s1240] %v1339
                %v1341 = vld [vmem:[%s1247 + $0x170] sm:%s1240]
                %1342 = vst [vmem:[%s1248 + $0x2e0] sm:%s1240] %v1341
                %v1343 = vld [vmem:[%s1247 + $0x178] sm:%s1240]
                %1344 = vst [vmem:[%s1248 + $0x2f0] sm:%s1240] %v1343
                %v1345 = vld [vmem:[%s1247 + $0x180] sm:%s1240]
                %1346 = vst [vmem:[%s1248 + $0x300] sm:%s1240] %v1345
                %v1347 = vld [vmem:[%s1247 + $0x188] sm:%s1240]
                %1348 = vst [vmem:[%s1248 + $0x310] sm:%s1240] %v1347
                %v1349 = vld [vmem:[%s1247 + $0x190] sm:%s1240]
                %1350 = vst [vmem:[%s1248 + $0x320] sm:%s1240] %v1349
                %v1351 = vld [vmem:[%s1247 + $0x198] sm:%s1240]
                %1352 = vst [vmem:[%s1248 + $0x330] sm:%s1240] %v1351
                %v1353 = vld [vmem:[%s1247 + $0x1a0] sm:%s1240]
                %1354 = vst [vmem:[%s1248 + $0x340] sm:%s1240] %v1353
                %v1355 = vld [vmem:[%s1247 + $0x1a8] sm:%s1240]
                %1356 = vst [vmem:[%s1248 + $0x350] sm:%s1240] %v1355
                %v1357 = vld [vmem:[%s1247 + $0x1b0] sm:%s1240]
                %1358 = vst [vmem:[%s1248 + $0x360] sm:%s1240] %v1357
                %v1359 = vld [vmem:[%s1247 + $0x1b8] sm:%s1240]
                %1360 = vst [vmem:[%s1248 + $0x370] sm:%s1240] %v1359
                %v1361 = vld [vmem:[%s1247 + $0x1c0] sm:%s1240]
                %1362 = vst [vmem:[%s1248 + $0x380] sm:%s1240] %v1361
                %v1363 = vld [vmem:[%s1247 + $0x1c8] sm:%s1240]
                %1364 = vst [vmem:[%s1248 + $0x390] sm:%s1240] %v1363
                %v1365 = vld [vmem:[%s1247 + $0x1d0] sm:%s1240]
                %1366 = vst [vmem:[%s1248 + $0x3a0] sm:%s1240] %v1365
                %v1367 = vld [vmem:[%s1247 + $0x1d8] sm:%s1240]
                %1368 = vst [vmem:[%s1248 + $0x3b0] sm:%s1240] %v1367
                %v1369 = vld [vmem:[%s1247 + $0x1e0] sm:%s1240]
                %1370 = vst [vmem:[%s1248 + $0x3c0] sm:%s1240] %v1369
                %v1371 = vld [vmem:[%s1247 + $0x1e8] sm:%s1240]
                %1372 = vst [vmem:[%s1248 + $0x3d0] sm:%s1240] %v1371
                %v1373 = vld [vmem:[%s1247 + $0x1f0] sm:%s1240]
                %1374 = vst [vmem:[%s1248 + $0x3e0] sm:%s1240] %v1373
                %v1375 = vld [vmem:[%s1247 + $0x1f8] sm:%s1240]
                %1376 = vst [vmem:[%s1248 + $0x3f0] sm:%s1240] %v1375
                %v1377 = vld [vmem:[%s1247 + $0x200] sm:%s1240]
                %1378 = vst [vmem:[%s1248 + $0x400] sm:%s1240] %v1377
                %v1379 = vld [vmem:[%s1247 + $0x208] sm:%s1240]
                %1380 = vst [vmem:[%s1248 + $0x410] sm:%s1240] %v1379
                %v1381 = vld [vmem:[%s1247 + $0x210] sm:%s1240]
                %1382 = vst [vmem:[%s1248 + $0x420] sm:%s1240] %v1381
                %v1383 = vld [vmem:[%s1247 + $0x218] sm:%s1240]
                %1384 = vst [vmem:[%s1248 + $0x430] sm:%s1240] %v1383
                %v1385 = vld [vmem:[%s1247 + $0x220] sm:%s1240]
                %1386 = vst [vmem:[%s1248 + $0x440] sm:%s1240] %v1385
                %v1387 = vld [vmem:[%s1247 + $0x228] sm:%s1240]
                %1388 = vst [vmem:[%s1248 + $0x450] sm:%s1240] %v1387
                %v1389 = vld [vmem:[%s1247 + $0x230] sm:%s1240]
                %1390 = vst [vmem:[%s1248 + $0x460] sm:%s1240] %v1389
                %v1391 = vld [vmem:[%s1247 + $0x238] sm:%s1240]
                %1392 = vst [vmem:[%s1248 + $0x470] sm:%s1240] %v1391
                %v1393 = vld [vmem:[%s1247 + $0x240] sm:%s1240]
                %1394 = vst [vmem:[%s1248 + $0x480] sm:%s1240] %v1393
                %v1395 = vld [vmem:[%s1247 + $0x248] sm:%s1240]
                %1396 = vst [vmem:[%s1248 + $0x490] sm:%s1240] %v1395
                %v1397 = vld [vmem:[%s1247 + $0x250] sm:%s1240]
                %1398 = vst [vmem:[%s1248 + $0x4a0] sm:%s1240] %v1397
                %v1399 = vld [vmem:[%s1247 + $0x258] sm:%s1240]
                %1400 = vst [vmem:[%s1248 + $0x4b0] sm:%s1240] %v1399
                %v1401 = vld [vmem:[%s1247 + $0x260] sm:%s1240]
                %1402 = vst [vmem:[%s1248 + $0x4c0] sm:%s1240] %v1401
                %v1403 = vld [vmem:[%s1247 + $0x268] sm:%s1240]
                %1404 = vst [vmem:[%s1248 + $0x4d0] sm:%s1240] %v1403
                %v1405 = vld [vmem:[%s1247 + $0x270] sm:%s1240]
                %1406 = vst [vmem:[%s1248 + $0x4e0] sm:%s1240] %v1405
                %v1407 = vld [vmem:[%s1247 + $0x278] sm:%s1240]
                %1408 = vst [vmem:[%s1248 + $0x4f0] sm:%s1240] %v1407
                %v1409 = vld [vmem:[%s1247 + $0x280] sm:%s1240]
                %1410 = vst [vmem:[%s1248 + $0x500] sm:%s1240] %v1409
                %v1411 = vld [vmem:[%s1247 + $0x288] sm:%s1240]
                %1412 = vst [vmem:[%s1248 + $0x510] sm:%s1240] %v1411
                %v1413 = vld [vmem:[%s1247 + $0x290] sm:%s1240]
                %1414 = vst [vmem:[%s1248 + $0x520] sm:%s1240] %v1413
                %v1415 = vld [vmem:[%s1247 + $0x298] sm:%s1240]
                %1416 = vst [vmem:[%s1248 + $0x530] sm:%s1240] %v1415
                %v1417 = vld [vmem:[%s1247 + $0x2a0] sm:%s1240]
                %1418 = vst [vmem:[%s1248 + $0x540] sm:%s1240] %v1417
                %v1419 = vld [vmem:[%s1247 + $0x2a8] sm:%s1240]
                %1420 = vst [vmem:[%s1248 + $0x550] sm:%s1240] %v1419
                %v1421 = vld [vmem:[%s1247 + $0x2b0] sm:%s1240]
                %1422 = vst [vmem:[%s1248 + $0x560] sm:%s1240] %v1421
                %v1423 = vld [vmem:[%s1247 + $0x2b8] sm:%s1240]
                %1424 = vst [vmem:[%s1248 + $0x570] sm:%s1240] %v1423
                %v1425 = vld [vmem:[%s1247 + $0x2c0] sm:%s1240]
                %1426 = vst [vmem:[%s1248 + $0x580] sm:%s1240] %v1425
                %v1427 = vld [vmem:[%s1247 + $0x2c8] sm:%s1240]
                %1428 = vst [vmem:[%s1248 + $0x590] sm:%s1240] %v1427
                %v1429 = vld [vmem:[%s1247 + $0x2d0] sm:%s1240]
                %1430 = vst [vmem:[%s1248 + $0x5a0] sm:%s1240] %v1429
                %v1431 = vld [vmem:[%s1247 + $0x2d8] sm:%s1240]
                %1432 = vst [vmem:[%s1248 + $0x5b0] sm:%s1240] %v1431
                %v1433 = vld [vmem:[%s1247 + $0x2e0] sm:%s1240]
                %1434 = vst [vmem:[%s1248 + $0x5c0] sm:%s1240] %v1433
                %v1435 = vld [vmem:[%s1247 + $0x2e8] sm:%s1240]
                %1436 = vst [vmem:[%s1248 + $0x5d0] sm:%s1240] %v1435
                %v1437 = vld [vmem:[%s1247 + $0x2f0] sm:%s1240]
                %1438 = vst [vmem:[%s1248 + $0x5e0] sm:%s1240] %v1437
                %v1439 = vld [vmem:[%s1247 + $0x2f8] sm:%s1240]
                %1440 = vst [vmem:[%s1248 + $0x5f0] sm:%s1240] %v1439
                %v1441 = vld [vmem:[%s1247 + $0x300] sm:%s1240]
                %1442 = vst [vmem:[%s1248 + $0x600] sm:%s1240] %v1441
                %v1443 = vld [vmem:[%s1247 + $0x308] sm:%s1240]
                %1444 = vst [vmem:[%s1248 + $0x610] sm:%s1240] %v1443
                %v1445 = vld [vmem:[%s1247 + $0x310] sm:%s1240]
                %1446 = vst [vmem:[%s1248 + $0x620] sm:%s1240] %v1445
                %v1447 = vld [vmem:[%s1247 + $0x318] sm:%s1240]
                %1448 = vst [vmem:[%s1248 + $0x630] sm:%s1240] %v1447
                %v1449 = vld [vmem:[%s1247 + $0x320] sm:%s1240]
                %1450 = vst [vmem:[%s1248 + $0x640] sm:%s1240] %v1449
                %v1451 = vld [vmem:[%s1247 + $0x328] sm:%s1240]
                %1452 = vst [vmem:[%s1248 + $0x650] sm:%s1240] %v1451
                %v1453 = vld [vmem:[%s1247 + $0x330] sm:%s1240]
                %1454 = vst [vmem:[%s1248 + $0x660] sm:%s1240] %v1453
                %v1455 = vld [vmem:[%s1247 + $0x338] sm:%s1240]
                %1456 = vst [vmem:[%s1248 + $0x670] sm:%s1240] %v1455
                %v1457 = vld [vmem:[%s1247 + $0x340] sm:%s1240]
                %1458 = vst [vmem:[%s1248 + $0x680] sm:%s1240] %v1457
                %v1459 = vld [vmem:[%s1247 + $0x348] sm:%s1240]
                %1460 = vst [vmem:[%s1248 + $0x690] sm:%s1240] %v1459
                %v1461 = vld [vmem:[%s1247 + $0x350] sm:%s1240]
                %1462 = vst [vmem:[%s1248 + $0x6a0] sm:%s1240] %v1461
                %v1463 = vld [vmem:[%s1247 + $0x358] sm:%s1240]
                %1464 = vst [vmem:[%s1248 + $0x6b0] sm:%s1240] %v1463
                %v1465 = vld [vmem:[%s1247 + $0x360] sm:%s1240]
                %1466 = vst [vmem:[%s1248 + $0x6c0] sm:%s1240] %v1465
                %v1467 = vld [vmem:[%s1247 + $0x368] sm:%s1240]
                %1468 = vst [vmem:[%s1248 + $0x6d0] sm:%s1240] %v1467
                %v1469 = vld [vmem:[%s1247 + $0x370] sm:%s1240]
                %1470 = vst [vmem:[%s1248 + $0x6e0] sm:%s1240] %v1469
                %v1471 = vld [vmem:[%s1247 + $0x378] sm:%s1240]
                %1472 = vst [vmem:[%s1248 + $0x6f0] sm:%s1240] %v1471
                %v1473 = vld [vmem:[%s1247 + $0x380] sm:%s1240]
                %1474 = vst [vmem:[%s1248 + $0x700] sm:%s1240] %v1473
                %v1475 = vld [vmem:[%s1247 + $0x388] sm:%s1240]
                %1476 = vst [vmem:[%s1248 + $0x710] sm:%s1240] %v1475
                %v1477 = vld [vmem:[%s1247 + $0x390] sm:%s1240]
                %1478 = vst [vmem:[%s1248 + $0x720] sm:%s1240] %v1477
                %v1479 = vld [vmem:[%s1247 + $0x398] sm:%s1240]
                %1480 = vst [vmem:[%s1248 + $0x730] sm:%s1240] %v1479
                %v1481 = vld [vmem:[%s1247 + $0x3a0] sm:%s1240]
                %1482 = vst [vmem:[%s1248 + $0x740] sm:%s1240] %v1481
                %v1483 = vld [vmem:[%s1247 + $0x3a8] sm:%s1240]
                %1484 = vst [vmem:[%s1248 + $0x750] sm:%s1240] %v1483
                %v1485 = vld [vmem:[%s1247 + $0x3b0] sm:%s1240]
                %1486 = vst [vmem:[%s1248 + $0x760] sm:%s1240] %v1485
                %v1487 = vld [vmem:[%s1247 + $0x3b8] sm:%s1240]
                %1488 = vst [vmem:[%s1248 + $0x770] sm:%s1240] %v1487
                %v1489 = vld [vmem:[%s1247 + $0x3c0] sm:%s1240]
                %1490 = vst [vmem:[%s1248 + $0x780] sm:%s1240] %v1489
                %v1491 = vld [vmem:[%s1247 + $0x3c8] sm:%s1240]
                %1492 = vst [vmem:[%s1248 + $0x790] sm:%s1240] %v1491
                %v1493 = vld [vmem:[%s1247 + $0x3d0] sm:%s1240]
                %1494 = vst [vmem:[%s1248 + $0x7a0] sm:%s1240] %v1493
                %v1495 = vld [vmem:[%s1247 + $0x3d8] sm:%s1240]
                %1496 = vst [vmem:[%s1248 + $0x7b0] sm:%s1240] %v1495
                %v1497 = vld [vmem:[%s1247 + $0x3e0] sm:%s1240]
                %1498 = vst [vmem:[%s1248 + $0x7c0] sm:%s1240] %v1497
                %v1499 = vld [vmem:[%s1247 + $0x3e8] sm:%s1240]
                %1500 = vst [vmem:[%s1248 + $0x7d0] sm:%s1240] %v1499
                %v1501 = vld [vmem:[%s1247 + $0x3f0] sm:%s1240]
                %1502 = vst [vmem:[%s1248 + $0x7e0] sm:%s1240] %v1501
                %v1503 = vld [vmem:[%s1247 + $0x3f8] sm:%s1240]
                %1504 = vst [vmem:[%s1248 + $0x7f0] sm:%s1240] %v1503
              $region87: #{tpu_custom_call.1} parent=81 // loop_footer
                %s1246 = sadd.s32 1, %s1242
              $region88: #{tpu_custom_call.1} parent=81 // loop_footer_branch
                %1241 = sbr.rel target = $region84
              $region89: #{tpu_custom_call.1} parent=81 // loop_exit
                _
            $region82: #{tpu_custom_call.1} parent=73 // pred_fallthru
              _
          $region74: #{tpu_custom_call.1} parent=69 // pred_fallthru
            _
          %1773 = vnop
        $region70: #{tpu_custom_call.1} parent=61 // pred_fallthru
          _
      $region62: #{tpu_custom_call.1} parent=5 // pred_fallthru
        _
      %p1774 = scmp.le.s32.totalorder 2, %s8
      // Predicated region
      $region105: #{tpu_custom_call.1} parent=5 // pred_check
        %p1775 = pneg %p1774
      $region106: #{tpu_custom_call.1} parent=5 // pred_check_branch
        %1777 = sbr.rel (%p1775) target = $region108
      $region107: #{tpu_custom_call.1} parent=5 // pred_region
        %s1778 = ssub.s32 %s8, 2
        // Predicated region
        $region109: #{tpu_custom_call.1} parent=107 // pred_check
          %p1779 = pneg %p103
        $region110: #{tpu_custom_call.1} parent=107 // pred_check_branch
          %1781 = sbr.rel (%p1779) target = $region112
        $region111: #{tpu_custom_call.1} parent=107 // pred_region
          %s1782 = sand.u32 %s88, 1
          %s1783 = sand.u32 %s88, 1
          %s1784 = smul.addr %s1783, 1024
          %s1785 = scalar_lea.vmem [#allocation3], %s1784
        $region112: #{tpu_custom_call.1} parent=107 // pred_fallthru
          _
      $region108: #{tpu_custom_call.1} parent=5 // pred_fallthru
        _
    $region6: #{tpu_custom_call.1} parent=1 // loop_footer
      %s12 = sadd.s32 1, %s8
    $region7: #{tpu_custom_call.1} parent=1 // loop_footer_branch
      %7 = sbr.rel target = $region3
    $region8: #{tpu_custom_call.1} parent=1 // loop_exit
      _

</llo_original>
